<compile_context>
chip_gen: v5e
topology: v5e:2x2
jax: 0.10.0
libtpu: 0.0.40
codegen_flags: <defaults>
</compile_context>

<pallas_src>
import math
import functools

import jax
import jax.numpy as jnp
from jax import lax
from jax.experimental import pallas as pl
from jax.experimental.pallas import tpu as pltpu


def _round_up(a, b):
    return ((a + b - 1) // b) * b


def _fourier_kernel(x_ref, o_ref, *, input_dim, num_freqs, logspace,
                    kernel_relayout):
    """x_ref: (d_pad, T) feature-major tile (rows on lanes).

    o_ref: (T, out_dim) channels-last if kernel_relayout, else
           (d_pad + 2*D*F, T) feature-major.
    """
    D, F = input_dim, num_freqs
    DF = D * F
    d_pad = x_ref.shape[0]

    xT = x_ref[...].astype(jnp.float32)          # (d_pad, T), rows on the lane axis

    # Frequency column (F, 1), rebuilt in-register (no HBM input, no dense const).
    if logspace:
        fi = lax.broadcasted_iota(jnp.int32, (F, 1), 0)
        freqs = jnp.left_shift(jnp.int32(1), fi).astype(jnp.float32)   # exact 2**f
    else:
        fi = lax.broadcasted_iota(jnp.float32, (F, 1), 0)
        step = (2.0 ** (F - 1) - 1.0) / max(F - 1, 1)
        freqs = 1.0 + fi * jnp.float32(step)

    # embed row (d*F + f) = x[d] * freqs[f]  -- dim-major / freq-minor, identical to
    # the PyTorch .view(..., -1) flattening.  Every piece is lane-dense; the sublane
    # concat offsets are multiples of 8 for the default num_freqs=8.
    embedT = jnp.concatenate(
        [xT[d:d + 1, :] * freqs for d in range(D)], axis=0)            # (D*F, T)

    # Real sin AND cos (matches the reference; no phase-shift approximation).
    trigT = jnp.concatenate([jnp.sin(embedT), jnp.cos(embedT)], axis=0)  # (2*D*F, T)

    if kernel_relayout:
        # Single relayout back to channels-last right before the store.  Both
        # transposes are on f32 arrays whose (sublane, lane) dims are multiples
        # of (8, 128); the XLU work hides under the VALU sin/cos polynomials.
        x_cl = xT.T                                   # (T, d_pad)
        trig_cl = trigT.T                             # (T, 2*D*F)
        o_ref[:, 0:D] = x_cl[:, 0:D].astype(o_ref.dtype)
        o_ref[:, D:D + 2 * DF] = trig_cl.astype(o_ref.dtype)
    else:
        # Half-step fallback: emit feature-major; wrapper relayouts once in XLA.
        o_ref[0:d_pad, :] = xT.astype(o_ref.dtype)
        o_ref[d_pad:d_pad + 2 * DF, :] = trigT.astype(o_ref.dtype)


def _fourier_embed_impl(x, num_freqs, logspace, tile_rows, min_grid_steps,
                        kernel_relayout):
    lead = x.shape[:-1]
    d = x.shape[-1]
    F = num_freqs
    out_dim = d * (2 * F + 1)

    n = math.prod(lead) if lead else 1
    x2 = x.reshape(n, d)

    # Rows sit on the 128-lane axis of the transposed input, so the tile must be a
    # multiple of 128 (this also satisfies every dtype's min-tile rules for the
    # (tile, out_dim) output block).  Clamp so small inputs still get >= ~4 grid
    # steps: keeps v7x's two TensorCores busy and the pipeline 2-deep everywhere.
    tile_rows = max(128, (int(tile_rows) // 128) * 128)
    tile = int(min(tile_rows,
                   max(128, _round_up(pl.cdiv(n, max(1, min_grid_steps)), 128))))
    n_pad = _round_up(n, tile)
    d_pad = _round_up(d, 8)

    # Feature-major (transposed), zero-padded input: (d_pad, n_pad).
    xT = jnp.pad(x2.T, ((0, d_pad - d), (0, n_pad - n)))

    kernel = functools.partial(
        _fourier_kernel, input_dim=d, num_freqs=F, logspace=logspace,
        kernel_relayout=kernel_relayout)

    in_specs = [pl.BlockSpec((d_pad, tile), lambda i: (0, i))]
    if kernel_relayout:
        out_shape = jax.ShapeDtypeStruct((n_pad, out_dim), x.dtype)
        out_specs = pl.BlockSpec((tile, out_dim), lambda i: (i, 0))
    else:
        fm_rows = d_pad + 2 * d * F
        out_shape = jax.ShapeDtypeStruct((fm_rows, n_pad), x.dtype)
        out_specs = pl.BlockSpec((fm_rows, tile), lambda i: (0, i))

    # VMEM at tile=2048 (f32): in 2 x 64 KiB, out 2 x ~1 MiB (51 lanes pad to 128),
    # plus ~3 MiB of in-kernel intermediates -> ~5.5 MiB total; 32 MiB limit gives
    # generous headroom on v5e/v6e (128 MiB physical) and v7x (64 MiB physical).
    out = pl.pallas_call(
        kernel,
        out_shape=out_shape,
        grid_spec=pltpu.PrefetchScalarGridSpec(
            num_scalar_prefetch=0,
            grid=(n_pad // tile,),
            in_specs=in_specs,
            out_specs=out_specs,
        ),
        compiler_params=pltpu.CompilerParams(
            dimension_semantics=("parallel",),
            vmem_limit_bytes=32 * 1024 * 1024,
        ),
    )(xT)

    if kernel_relayout:
        out = out[:n]
    else:
        # [x rows | trig rows] -> channels-last, done once in XLA (memory-light
        # relative to the VALU-bound kernel).
        out = jnp.concatenate([out[:d], out[d_pad:]], axis=0).T[:n]
    return out.reshape(*lead, out_dim)


def fourier_embed(x, num_freqs=8, logspace=True, tile_rows=2048, min_grid_steps=4):
    """Pallas implementation of FourierEmbedder.forward(x). x: (..., input_dim)."""
    try:
        return _fourier_embed_impl(x, num_freqs, logspace, tile_rows,
                                   min_grid_steps, kernel_relayout=True)
    except Exception:
        # If this Mosaic build cannot lower the in-kernel (48, T) -> (T, 48)
        # transpose, keep the lane-dense compute and relayout outside the kernel.
        return _fourier_embed_impl(x, num_freqs, logspace, tile_rows,
                                   min_grid_steps, kernel_relayout=False)


def fourier_embed_ref(x, frequencies):
    """Pure-JAX reference mirroring the PyTorch forward exactly."""
    embed = (x[..., None] * frequencies).reshape(*x.shape[:-1], -1)
    return jnp.concatenate([x, jnp.sin(embed), jnp.cos(embed)], axis=-1)


if __name__ == "__main__":
    num_freqs = 8
    input_dim = 3
    # logspace=True buffer of the PyTorch module: 2.0 ** arange(num_freqs)
    frequencies = 2.0 ** jnp.arange(num_freqs, dtype=jnp.float32)

    key = jax.random.PRNGKey(0)
    # small point-cloud-like input: (batch=2, num_points=128, input_dim=3)
    x = jax.random.normal(key, (2, 128, input_dim), dtype=jnp.float32)

    out = fourier_embed(x, num_freqs=num_freqs, logspace=True)
    out = jax.block_until_ready(out)

    ref = fourier_embed_ref(x, frequencies)

    expected_out_dim = input_dim * (2 * num_freqs + 1)
    assert out.shape == (2, 128, expected_out_dim), out.shape
    assert out.dtype == x.dtype
    assert jnp.allclose(out, ref, atol=1e-5, rtol=1e-5), \
        float(jnp.max(jnp.abs(out - ref)))

    print("KERNEL_OK")
</pallas_src>

<mosaic_0001>
module attributes {stable_mosaic.version = 11 : i64} {
  func.func @_fourier_kernel(%arg0: i32, %arg1: memref<8x128xf32, #tpu.memory_space<vmem>>, %arg2: memref<128x51xf32, #tpu.memory_space<vmem>>) attributes {dimension_semantics = [#tpu.dimension_semantics<parallel>], iteration_bounds = array<i64: 2>, scalar_prefetch = 0 : i64, scratch_operands = 0 : i64, tpu.core_type = #tpu.core_type<tc>, window_params = [{transform_indices = @transform_0, window_bounds = array<i64: 8, 128>}, {transform_indices = @transform_1, window_bounds = array<i64: 128, 51>}]} {
    %c0 = arith.constant 0 : index
    %c0_0 = arith.constant 0 : index
    %0 = vector.load %arg1[%c0, %c0_0] : memref<8x128xf32, #tpu.memory_space<vmem>>, vector<8x128xf32>
    %1 = tpu.iota {dimensions = array<i32: 0>} : vector<8x1xi32>
    %c1_i32 = arith.constant 1 : i32
    %2 = vector.broadcast %c1_i32 : i32 to vector<8x1xi32>
    %3 = arith.shli %2, %1 : vector<8x1xi32>
    %4 = arith.sitofp %3 : vector<8x1xi32> to vector<8x1xf32>
    %5 = vector.extract_strided_slice %0 {offsets = [0, 0], sizes = [1, 128], strides = [1, 1]} : vector<8x128xf32> to vector<1x128xf32>
    %6 = vector.broadcast %5 : vector<1x128xf32> to vector<8x128xf32>
    %7 = vector.broadcast %4 : vector<8x1xf32> to vector<8x128xf32>
    %8 = arith.mulf %6, %7 : vector<8x128xf32>
    %9 = vector.extract_strided_slice %0 {offsets = [1, 0], sizes = [1, 128], strides = [1, 1]} : vector<8x128xf32> to vector<1x128xf32>
    %10 = vector.broadcast %9 : vector<1x128xf32> to vector<8x128xf32>
    %11 = vector.broadcast %4 : vector<8x1xf32> to vector<8x128xf32>
    %12 = arith.mulf %10, %11 : vector<8x128xf32>
    %13 = vector.extract_strided_slice %0 {offsets = [2, 0], sizes = [1, 128], strides = [1, 1]} : vector<8x128xf32> to vector<1x128xf32>
    %14 = vector.broadcast %13 : vector<1x128xf32> to vector<8x128xf32>
    %15 = vector.broadcast %4 : vector<8x1xf32> to vector<8x128xf32>
    %16 = arith.mulf %14, %15 : vector<8x128xf32>
    %17 = tpu.concatenate %8, %12, %16 in 0 : vector<8x128xf32>, vector<8x128xf32>, vector<8x128xf32> -> vector<24x128xf32>
    %18 = math.sin %17 : vector<24x128xf32>
    %19 = math.cos %17 : vector<24x128xf32>
    %20 = tpu.concatenate %18, %19 in 0 : vector<24x128xf32>, vector<24x128xf32> -> vector<48x128xf32>
    %21 = tpu.transpose %0, [1, 0] : vector<8x128xf32> -> vector<128x8xf32>
    %22 = tpu.transpose %20, [1, 0] : vector<48x128xf32> -> vector<128x48xf32>
    %23 = vector.extract_strided_slice %21 {offsets = [0, 0], sizes = [128, 3], strides = [1, 1]} : vector<128x8xf32> to vector<128x3xf32>
    %c0_1 = arith.constant 0 : index
    %c0_2 = arith.constant 0 : index
    %24 = vector.load %arg2[%c0_1, %c0_2] : memref<128x51xf32, #tpu.memory_space<vmem>>, vector<128x3xf32>
    tpu.vector_store %arg2[%c0_1, %c0_2], %23 {strides = array<i32>} : memref<128x51xf32, #tpu.memory_space<vmem>>, vector<128x3xf32>,
    %c0_3 = arith.constant 0 : index
    %c3 = arith.constant 3 : index
    %25 = vector.load %arg2[%c0_3, %c3] : memref<128x51xf32, #tpu.memory_space<vmem>>, vector<128x48xf32>
    tpu.vector_store %arg2[%c0_3, %c3], %22 {strides = array<i32>} : memref<128x51xf32, #tpu.memory_space<vmem>>, vector<128x48xf32>,
    return
  }
  func.func @transform_0(%arg0: i32) -> (i32, i32) {
    %c0_i32 = arith.constant 0 : i32
    %c0_i32_0 = arith.constant 0 : i32
    return %c0_i32, %arg0 : i32, i32
  }
  func.func @transform_1(%arg0: i32) -> (i32, i32) {
    %c0_i32 = arith.constant 0 : i32
    %c0_i32_0 = arith.constant 0 : i32
    return %arg0, %c0_i32 : i32, i32
  }
}

module attributes {stable_mosaic.version = 11 : i64} {
  func.func @_fourier_kernel(%arg0: i32, %arg1: memref<8x128xf32, #tpu.memory_space<vmem>>, %arg2: memref<56x128xf32, #tpu.memory_space<vmem>>) attributes {dimension_semantics = [#tpu.dimension_semantics<parallel>], iteration_bounds = array<i64: 2>, scalar_prefetch = 0 : i64, scratch_operands = 0 : i64, tpu.core_type = #tpu.core_type<tc>, window_params = [{transform_indices = @transform_0, window_bounds = array<i64: 8, 128>}, {transform_indices = @transform_1, window_bounds = array<i64: 56, 128>}]} {
    %c0 = arith.constant 0 : index
    %c0_0 = arith.constant 0 : index
    %0 = vector.load %arg1[%c0, %c0_0] : memref<8x128xf32, #tpu.memory_space<vmem>>, vector<8x128xf32>
    %1 = tpu.iota {dimensions = array<i32: 0>} : vector<8x1xi32>
    %c1_i32 = arith.constant 1 : i32
    %2 = vector.broadcast %c1_i32 : i32 to vector<8x1xi32>
    %3 = arith.shli %2, %1 : vector<8x1xi32>
    %4 = arith.sitofp %3 : vector<8x1xi32> to vector<8x1xf32>
    %5 = vector.extract_strided_slice %0 {offsets = [0, 0], sizes = [1, 128], strides = [1, 1]} : vector<8x128xf32> to vector<1x128xf32>
    %6 = vector.broadcast %5 : vector<1x128xf32> to vector<8x128xf32>
    %7 = vector.broadcast %4 : vector<8x1xf32> to vector<8x128xf32>
    %8 = arith.mulf %6, %7 : vector<8x128xf32>
    %9 = vector.extract_strided_slice %0 {offsets = [1, 0], sizes = [1, 128], strides = [1, 1]} : vector<8x128xf32> to vector<1x128xf32>
    %10 = vector.broadcast %9 : vector<1x128xf32> to vector<8x128xf32>
    %11 = vector.broadcast %4 : vector<8x1xf32> to vector<8x128xf32>
    %12 = arith.mulf %10, %11 : vector<8x128xf32>
    %13 = vector.extract_strided_slice %0 {offsets = [2, 0], sizes = [1, 128], strides = [1, 1]} : vector<8x128xf32> to vector<1x128xf32>
    %14 = vector.broadcast %13 : vector<1x128xf32> to vector<8x128xf32>
    %15 = vector.broadcast %4 : vector<8x1xf32> to vector<8x128xf32>
    %16 = arith.mulf %14, %15 : vector<8x128xf32>
    %17 = tpu.concatenate %8, %12, %16 in 0 : vector<8x128xf32>, vector<8x128xf32>, vector<8x128xf32> -> vector<24x128xf32>
    %18 = math.sin %17 : vector<24x128xf32>
    %19 = math.cos %17 : vector<24x128xf32>
    %20 = tpu.concatenate %18, %19 in 0 : vector<24x128xf32>, vector<24x128xf32> -> vector<48x128xf32>
    %c0_1 = arith.constant 0 : index
    %c0_2 = arith.constant 0 : index
    %21 = vector.load %arg2[%c0_1, %c0_2] : memref<56x128xf32, #tpu.memory_space<vmem>>, vector<8x128xf32>
    tpu.vector_store %arg2[%c0_1, %c0_2], %0 {strides = array<i32>} : memref<56x128xf32, #tpu.memory_space<vmem>>, vector<8x128xf32>,
    %c8 = arith.constant 8 : index
    %c0_3 = arith.constant 0 : index
    %22 = vector.load %arg2[%c8, %c0_3] : memref<56x128xf32, #tpu.memory_space<vmem>>, vector<48x128xf32>
    tpu.vector_store %arg2[%c8, %c0_3], %20 {strides = array<i32>} : memref<56x128xf32, #tpu.memory_space<vmem>>, vector<48x128xf32>,
    return
  }
  func.func @transform_0(%arg0: i32) -> (i32, i32) {
    %c0_i32 = arith.constant 0 : i32
    %c0_i32_0 = arith.constant 0 : i32
    return %c0_i32, %arg0 : i32, i32
  }
  func.func @transform_1(%arg0: i32) -> (i32, i32) {
    %c0_i32 = arith.constant 0 : i32
    %c0_i32_0 = arith.constant 0 : i32
    return %c0_i32, %arg0 : i32, i32
  }
}

</mosaic_0001>

<llo_original>
// kernel: tpu_custom_call.1
$region0: #{tpu_custom_call.1}
  #allocation0 [shape = 'u32[]', space=smem, size = 0x4, offset = 0x4, fixed_abs, tag = 'smem constant byte address 0x4 - core index']
  #allocation1 [shape = 'u32[72,128]{1,0:T(1,128)}', space=vmem, size = 0x9000, scoped, tag = 'internal scratch']
  %s0 = inlined_call_operand.hbm [shape: f32[8,256], index: 0, kind: input, shape index: {}]
  %s1 = inlined_call_operand.vmem [shape: f32[256,51], index: 1, kind: output, shape index: {}]
  %s2 = sld [smem:[#allocation0]]
  $region41: #{tpu_custom_call.1} parent=0
    _
  %s4 = ssub.s32 1, %s2
  %s5 = scalar_select 0, %s4, %s2
  $region1: #{tpu_custom_call.1} parent=0
    #allocation2 [shape = 'u8[8192]{0}', space=vmem, size = 0x2000, scoped, tag = 'input window, operand 0']
    #allocation3 [shape = 's32[2]{0}', space=sflag, size = 0x8, scoped, tag = 'scoped memory for tpu_custom_call.1']
    %6 = vsyncpa [#allocation3], 0
    %s7 = scalar_lea.sflag [#allocation3], 1
    %8 = vsyncpa %s7, 0
    loop: start=0, step=1, limit=4
    $region2: #{tpu_custom_call.1} parent=1 // loop_pre_header
      _
    $region3: #{tpu_custom_call.1} parent=1 // loop_header
      %s10 = sphi 0, %s14
      %p11 = scmp.ge.s32.totalorder %s10, 4
      %s20 = sphi 0, %s22
      %s23 = sphi 0, %s20
      %s24 = sphi 0, %s23
      %s40 = sphi 0, %s24
      %s46 = sphi 0, %s48
      %s49 = sphi 0, %s46
      %s50 = sphi 0, %s49
      %s66 = sphi 0, %s50
    $region4: #{tpu_custom_call.1} parent=1 // loop_header_branch
      %13 = sbr.rel (%p11) target = $region8
    $region5: #{tpu_custom_call.1} parent=1 // loop_body
      %s15 = ssub.s32 %s10, 1
      %s16 = ssub.s32 %s10, 2
      %s17 = sadd.s32 %s10, 1
      %s18 = ssub.s32 %s10, %s17
      %p19 = scmp.eq.s32.totalorder %s18, 0
      %s21 = sadd.s32 %s20, 1
      %s22 = scalar_select %p19, %s20, %s21
      %p25 = pneg %p19
      %p26 = scmp.eq.s32.totalorder %s10, 1
      %p27 = por %p25, %p26
      %p28 = scmp.ne.s32.totalorder %s20, %s23
      %p29 = scmp.eq.s32.totalorder %s10, 0
      %p30 = por %p28, %p29
      %p31 = scmp.ne.s32.totalorder %s20, %s23
      %p32 = scmp.eq.s32.totalorder %s15, 1
      %p33 = por %p31, %p32
      %p34 = scmp.ne.s32.totalorder %s23, %s24
      %p35 = scmp.eq.s32.totalorder %s15, 0
      %p36 = por %p34, %p35
      %p37 = scmp.ne.s32.totalorder %s23, %s24
      %p38 = scmp.eq.s32.totalorder %s16, 1
      %p39 = por %p37, %p38
      %p41 = scmp.ne.s32.totalorder %s24, %s40
      %p42 = scmp.eq.s32.totalorder %s16, 0
      %p43 = por %p41, %p42
      %s44 = ssub.s32 %s10, %s17
      %p45 = scmp.eq.s32.totalorder %s44, 0
      %s47 = sadd.s32 %s46, 1
      %s48 = scalar_select %p45, %s46, %s47
      %p51 = pneg %p45
      %p52 = scmp.eq.s32.totalorder %s10, 1
      %p53 = por %p51, %p52
      %p54 = scmp.ne.s32.totalorder %s46, %s49
      %p55 = scmp.eq.s32.totalorder %s10, 0
      %p56 = por %p54, %p55
      %p57 = scmp.ne.s32.totalorder %s46, %s49
      %p58 = scmp.eq.s32.totalorder %s15, 1
      %p59 = por %p57, %p58
      %p60 = scmp.ne.s32.totalorder %s49, %s50
      %p61 = scmp.eq.s32.totalorder %s15, 0
      %p62 = por %p60, %p61
      %p63 = scmp.ne.s32.totalorder %s49, %s50
      %p64 = scmp.eq.s32.totalorder %s16, 1
      %p65 = por %p63, %p64
      %p67 = scmp.ne.s32.totalorder %s50, %s66
      %p68 = scmp.eq.s32.totalorder %s16, 0
      %p69 = por %p67, %p68
      %p70 = scmp.le.s32.totalorder 1, %s10
      %p71 = scmp.lt.s32.totalorder %s10, 3
      %p72 = pnand %p70, %p71
      %p73 = pneg %p72
      // Predicated region
      $region9: #{tpu_custom_call.1} parent=5 // pred_check
        _
      $region10: #{tpu_custom_call.1} parent=5 // pred_check_branch
        %75 = sbr.rel (%p72) target = $region12
      $region11: #{tpu_custom_call.1} parent=5 // pred_region
        %s76 = ssub.s32 %s10, 1
      $region12: #{tpu_custom_call.1} parent=5 // pred_fallthru
        _
      %p77 = scmp.lt.s32.totalorder %s10, 2
      // Predicated region
      $region13: #{tpu_custom_call.1} parent=5 // pred_check
        %p78 = pneg %p77
      $region14: #{tpu_custom_call.1} parent=5 // pred_check_branch
        %80 = sbr.rel (%p78) target = $region16
      $region15: #{tpu_custom_call.1} parent=5 // pred_region
        // Predicated region
        $region17: #{tpu_custom_call.1} parent=15 // pred_check
          %p81 = pneg %p30
        $region18: #{tpu_custom_call.1} parent=15 // pred_check_branch
          %83 = sbr.rel (%p81) target = $region20
        $region19: #{tpu_custom_call.1} parent=15 // pred_region
          %s84 = sand.u32 %s20, 1
          %s85 = scalar_lea.sflag [#allocation3], %s84
          %s86 = sand.u32 %s20, 1
          %s87 = smul.addr %s86, 8
          %s88 = scalar_lea.vmem [#allocation2], %s87
          %90 = vsyncadd %s85, 0
          %s91 = smul.addr %s10, 8
          %s92 = scalar_lea.hbm %s0, %s91
          %s94 = sshll.u32 %s92, 4
          %s95 = int_to_ptr.hbm [resolvable:$true] %s94
          %s96 = sshll.u32 %s88, 4
          %s97 = int_to_ptr.vmem [resolvable:$true] %s96
          %99 = dma.hbm_to_vmem [thread:$0]  %s95, 128, %s97, %s85
        $region20: #{tpu_custom_call.1} parent=15 // pred_fallthru
          _
      $region16: #{tpu_custom_call.1} parent=5 // pred_fallthru
        _
      %p100 = scmp.le.s32.totalorder 1, %s10
      %p101 = scmp.lt.s32.totalorder %s10, 3
      %p102 = pnand %p100, %p101
      %p103 = pneg %p102
      // Predicated region
      $region21: #{tpu_custom_call.1} parent=5 // pred_check
        _
      $region22: #{tpu_custom_call.1} parent=5 // pred_check_branch
        %105 = sbr.rel (%p102) target = $region24
      $region23: #{tpu_custom_call.1} parent=5 // pred_region
        %s106 = ssub.s32 %s10, 1
        %s107 = sand.u32 %s23, 1
        %s108 = scalar_lea.sflag [#allocation3], %s107
        %s109 = sand.u32 %s23, 1
        %s110 = smul.addr %s109, 8
        %s111 = scalar_lea.vmem [#allocation2], %s110
        // Predicated region
        $region25: #{tpu_custom_call.1} parent=23 // pred_check
          %p112 = pneg %p36
        $region26: #{tpu_custom_call.1} parent=23 // pred_check_branch
          %114 = sbr.rel (%p112) target = $region28
        $region27: #{tpu_custom_call.1} parent=23 // pred_region
          %116 = dma.done %s108, 128
        $region28: #{tpu_custom_call.1} parent=23 // pred_fallthru
          _
        %s117 = sand.u32 %s23, 1
        %s118 = scalar_lea.sflag [#allocation3], %s117
        %s119 = sand.u32 %s23, 1
        %s120 = smul.addr %s119, 8
        %s121 = scalar_lea.vmem [#allocation2], %s120
        %p122 = pneg %p36
        %p123 = pneg %p33
        %p124 = pneg %p62
        %p125 = pneg %p59
        %s126 = smul.u32 16, %s15
        %p127 = scmp.lt.s32.totalorder %s126, 31
        %s128 = scalar_select %p127, %s126, 31
        %s129 = smul.addr %s128, 8
        %s130 = scalar_lea.vmem %s1, %s129
        %s131 = smul.u32 16, %s15
        %p132 = scmp.lt.s32.totalorder %s131, 31
        %s133 = scalar_select %p132, %s131, 31
        %s134 = smul.addr %s133, 8
        %s135 = scalar_lea.vmem %s1, %s134
        %s136 = smul.u32 16, %s15
        %v137 = vld [vmem:[%s111] sm:$0xff]
        %v138 = vlaneseq
        %v139 = vshrl.u32 %v138, 7
        %v140 = vshll.u32 1, %v139
        %v141 = vcvt.s32.f32 %v140
        %v142 = vperm.slane %v137, 0
        %v143 = vmul.f32 %v142, %v141
        %v144 = vperm.slane %v137, 1
        %v145 = vmul.f32 %v144, %v141
        %v146 = vperm.slane %v137, 2
        %v147 = vmul.f32 %v146, %v141
        %v148 = vand.u32 2147483647, %v143
        %vm149 = vcmp.le.f32.partialorder %v148, 0.7853982
        %vm150 = vcmp.lt.s32.totalorder %v143, 0
        %v151 = vand.u32 %v143, 2139095040
        %v152 = vshrl.u32 %v151, 23
        %v153 = vsub.s32 %v152, 127
        %v154 = vand.u32 2147483647, %v143
        %v155 = vand.u32 %v154, 8388607
        %v156 = vor.u32 %v155, 8388608
        %v157 = vsub.s32 0, %v156
        %v158 = vadd.s32 %v153, 1
        %vm159 = vcmp.gt.s32.totalorder %v158, 0
        %v160 = vsel %vm159, %v158, 0
        %v161 = vshrl.u32 %v160, 5
        %v162 = vand.u32 %v160, 31
        %v163 = vsub.s32 32, %v162
        %v164 = vshrl.u32 683565275, %v163
        %v165 = vshll.u32 683565275, %v162
        %v166 = vshrl.u32 2475754826, %v163
        %v167 = vor.u32 %v165, %v166
        %v168 = vshll.u32 2475754826, %v162
        %v169 = vshrl.u32 2131351028, %v163
        %v170 = vor.u32 %v168, %v169
        %v171 = vshll.u32 2131351028, %v162
        %v172 = vshrl.u32 2102212464, %v163
        %v173 = vor.u32 %v171, %v172
        %v174 = vshll.u32 2102212464, %v162
        %v175 = vshrl.u32 920167782, %v163
        %v176 = vor.u32 %v174, %v175
        %v177 = vshll.u32 920167782, %v162
        %v178 = vshrl.u32 1326507024, %v163
        %v179 = vor.u32 %v177, %v178
        %vm180 = vcmp.lt.s32.totalorder %v161, 1
        %vm181 = vcmp.lt.s32.totalorder %v161, 2
        %vm182 = vcmp.lt.s32.totalorder %v161, 3
        %vm183 = vcmp.lt.s32.totalorder %v161, 4
        %v184 = vsel %vm180, %v164, %v167
        %v185 = vsel %vm183, %v173, 2102212464
        %v186 = vsel %vm182, %v170, %v185
        %v187 = vsel %vm181, %v184, %v186
        %v188 = vsel %vm180, %v167, %v170
        %v189 = vsel %vm183, %v176, 920167782
        %v190 = vsel %vm182, %v173, %v189
        %v191 = vsel %vm181, %v188, %v190
        %v192 = vsel %vm180, %v170, %v173
        %v193 = vsel %vm183, %v179, 1326507024
        %v194 = vsel %vm182, %v176, %v193
        %v195 = vsel %vm181, %v192, %v194
        %v196 = vshll.u32 %v156, 8
        %v197 = vand.u32 %v196, 65535
        %v198 = vshrl.u32 %v196, 16
        %v199 = vand.u32 %v195, 65535
        %v200 = vshrl.u32 %v195, 16
        %v201 = vmul.u32 %v197, %v199
        %v202 = vmul.u32 %v197, %v200
        %v203 = vmul.u32 %v198, %v199
        %v204 = vmul.u32 %v198, %v200
        %v205 = vshll.u32 %v202, 16
        %v206 = vshrl.u32 %v202, 16
        %v207 = vshll.u32 %v203, 16
        %v208 = vshrl.u32 %v203, 16
        %vm209 = vc.u32 %v201, %v205
        %v210 = vsel %vm209, 1, 0
        %v211 = vadd.s32 %v201, %v205
        %v212 = vadd.s32 %v204, %v210
        %vm213 = vc.u32 %v211, %v207
        %v214 = vsel %vm213, 1, 0
        %v215 = vadd.s32 %v211, %v207
        %v216 = vadd.s32 %v212, %v214
        %v217 = vadd.s32 %v216, %v206
        %v218 = vadd.s32 %v217, %v208
        %v219 = vand.u32 %v196, 65535
        %v220 = vshrl.u32 %v196, 16
        %v221 = vand.u32 %v191, 65535
        %v222 = vshrl.u32 %v191, 16
        %v223 = vmul.u32 %v219, %v221
        %v224 = vmul.u32 %v219, %v222
        %v225 = vmul.u32 %v220, %v221
        %v226 = vmul.u32 %v220, %v222
        %v227 = vshll.u32 %v224, 16
        %v228 = vshrl.u32 %v224, 16
        %v229 = vshll.u32 %v225, 16
        %v230 = vshrl.u32 %v225, 16
        %vm231 = vc.u32 %v223, %v227
        %v232 = vsel %vm231, 1, 0
        %v233 = vadd.s32 %v223, %v227
        %v234 = vadd.s32 %v226, %v232
        %vm235 = vc.u32 %v233, %v229
        %v236 = vsel %vm235, 1, 0
        %v237 = vadd.s32 %v233, %v229
        %v238 = vadd.s32 %v234, %v236
        %v239 = vadd.s32 %v238, %v228
        %v240 = vadd.s32 %v239, %v230
        %v241 = vmul.u32 %v196, %v187
        %v242 = vadd.s32 %v218, %v237
        %vm243 = vc.u32 %v218, %v237
        %v244 = vadd.s32 %v240, 1
        %v245 = vsel %vm243, %v244, %v240
        %v246 = vadd.s32 %v241, %v245
        %v247 = vadd.s32 %v246, 536870912
        %v248 = vshrl.u32 %v247, 30
        %v249 = vshll.u32 %v248, 30
        %v250 = vsub.s32 %v246, %v249
        %vm251 = vcmp.lt.s32.totalorder %v250, 0
        %v252 = vsub.s32 0, %v250
        %v253 = vsel %vm251, %v252, %v250
        %v254 = vclz %v253
        %v255 = vsub.s32 %v254, 2
        %vm256 = vcmp.gt.s32.totalorder 0, %v255
        %v257 = vsel %vm256, 0, %v255
        %v258 = vsub.s32 32, %v257
        %v259 = vshll.u32 %v250, %v257
        %v260 = vshrl.u32 %v242, %v258
        %v261 = vor.u32 %v259, %v260
        %v262 = vsub.s32 4294967266, %v257
        %v263 = vadd.s32 %v262, 127
        %v264 = vshll.u32 %v263, 23
        %v265 = vor.u32 4788187, %v264
        %v266 = vand.u32 2147483647, %v265
        %v268 = vcvt.s32.f32 %v261
        %v269 = vmul.f32 %v268, %v266
        %v270 = vxor.u32 %v269, 2147483648
        %v271 = vsel %vm150, %v270, %v269
        %v272 = vsub.s32 4, %v248
        %v273 = vsel %vm150, %v272, %v248
        %v274 = vsel %vm149, %v143, %v271
        %v275 = vsel %vm149, 0, %v273
        %v276 = vmul.f32 %v274, %v274
        %v277 = vmul.f32 %v276, -0.001358992
        %v278 = vadd.f32 %v277, 0.041655596
        %v279 = vmul.f32 %v276, %v278
        %v280 = vadd.f32 %v279, -0.4999988
        %v281 = vmul.f32 %v276, %v280
        %v282 = vadd.f32 1.0, %v281
        %v283 = vmul.f32 %v274, %v274
        %v284 = vmul.f32 %v283, -0.00019511016
        %v285 = vadd.f32 %v284, 0.008332121
        %v286 = vmul.f32 %v283, %v285
        %v287 = vadd.f32 %v286, -0.16666654
        %v288 = vmul.f32 %v283, %v287
        %v289 = vadd.f32 %v288, 1.0
        %v290 = vmul.f32 %v289, %v274
        %vm291 = vweird.f32 %v143
        %v292 = vadd.s32 %v275, 3
        %v293 = vand.u32 %v292, 3
        %vm294 = vcmp.lt.s32.totalorder %v293, 2
        %vm295 = vcmp.eq.s32.totalorder %v293, 0
        %v296 = vxor.u32 %v290, 2147483648
        %v297 = vsel %vm295, %v282, %v296
        %vm298 = vcmp.eq.s32.totalorder %v293, 2
        %v299 = vxor.u32 %v282, 2147483648
        %v300 = vsel %vm298, %v299, %v290
        %v301 = vsel %vm294, %v297, %v300
        %v302 = vsel %vm291, nan, %v301
        %v303 = vand.u32 2147483647, %v145
        %vm304 = vcmp.le.f32.partialorder %v303, 0.7853982
        %vm305 = vcmp.lt.s32.totalorder %v145, 0
        %v306 = vand.u32 %v145, 2139095040
        %v307 = vshrl.u32 %v306, 23
        %v308 = vsub.s32 %v307, 127
        %v309 = vand.u32 2147483647, %v145
        %v310 = vand.u32 %v309, 8388607
        %v311 = vor.u32 %v310, 8388608
        %v312 = vsub.s32 0, %v311
        %v313 = vadd.s32 %v308, 1
        %vm314 = vcmp.gt.s32.totalorder %v313, 0
        %v315 = vsel %vm314, %v313, 0
        %v316 = vshrl.u32 %v315, 5
        %v317 = vand.u32 %v315, 31
        %v318 = vsub.s32 32, %v317
        %v319 = vshrl.u32 683565275, %v318
        %v320 = vshll.u32 683565275, %v317
        %v321 = vshrl.u32 2475754826, %v318
        %v322 = vor.u32 %v320, %v321
        %v323 = vshll.u32 2475754826, %v317
        %v324 = vshrl.u32 2131351028, %v318
        %v325 = vor.u32 %v323, %v324
        %v326 = vshll.u32 2131351028, %v317
        %v327 = vshrl.u32 2102212464, %v318
        %v328 = vor.u32 %v326, %v327
        %v329 = vshll.u32 2102212464, %v317
        %v330 = vshrl.u32 920167782, %v318
        %v331 = vor.u32 %v329, %v330
        %v332 = vshll.u32 920167782, %v317
        %v333 = vshrl.u32 1326507024, %v318
        %v334 = vor.u32 %v332, %v333
        %vm335 = vcmp.lt.s32.totalorder %v316, 1
        %vm336 = vcmp.lt.s32.totalorder %v316, 2
        %vm337 = vcmp.lt.s32.totalorder %v316, 3
        %vm338 = vcmp.lt.s32.totalorder %v316, 4
        %v339 = vsel %vm335, %v319, %v322
        %v340 = vsel %vm338, %v328, 2102212464
        %v341 = vsel %vm337, %v325, %v340
        %v342 = vsel %vm336, %v339, %v341
        %v343 = vsel %vm335, %v322, %v325
        %v344 = vsel %vm338, %v331, 920167782
        %v345 = vsel %vm337, %v328, %v344
        %v346 = vsel %vm336, %v343, %v345
        %v347 = vsel %vm335, %v325, %v328
        %v348 = vsel %vm338, %v334, 1326507024
        %v349 = vsel %vm337, %v331, %v348
        %v350 = vsel %vm336, %v347, %v349
        %v351 = vshll.u32 %v311, 8
        %v352 = vand.u32 %v351, 65535
        %v353 = vshrl.u32 %v351, 16
        %v354 = vand.u32 %v350, 65535
        %v355 = vshrl.u32 %v350, 16
        %v356 = vmul.u32 %v352, %v354
        %v357 = vmul.u32 %v352, %v355
        %v358 = vmul.u32 %v353, %v354
        %v359 = vmul.u32 %v353, %v355
        %v360 = vshll.u32 %v357, 16
        %v361 = vshrl.u32 %v357, 16
        %v362 = vshll.u32 %v358, 16
        %v363 = vshrl.u32 %v358, 16
        %vm364 = vc.u32 %v356, %v360
        %v365 = vsel %vm364, 1, 0
        %v366 = vadd.s32 %v356, %v360
        %v367 = vadd.s32 %v359, %v365
        %vm368 = vc.u32 %v366, %v362
        %v369 = vsel %vm368, 1, 0
        %v370 = vadd.s32 %v366, %v362
        %v371 = vadd.s32 %v367, %v369
        %v372 = vadd.s32 %v371, %v361
        %v373 = vadd.s32 %v372, %v363
        %v374 = vand.u32 %v351, 65535
        %v375 = vshrl.u32 %v351, 16
        %v376 = vand.u32 %v346, 65535
        %v377 = vshrl.u32 %v346, 16
        %v378 = vmul.u32 %v374, %v376
        %v379 = vmul.u32 %v374, %v377
        %v380 = vmul.u32 %v375, %v376
        %v381 = vmul.u32 %v375, %v377
        %v382 = vshll.u32 %v379, 16
        %v383 = vshrl.u32 %v379, 16
        %v384 = vshll.u32 %v380, 16
        %v385 = vshrl.u32 %v380, 16
        %vm386 = vc.u32 %v378, %v382
        %v387 = vsel %vm386, 1, 0
        %v388 = vadd.s32 %v378, %v382
        %v389 = vadd.s32 %v381, %v387
        %vm390 = vc.u32 %v388, %v384
        %v391 = vsel %vm390, 1, 0
        %v392 = vadd.s32 %v388, %v384
        %v393 = vadd.s32 %v389, %v391
        %v394 = vadd.s32 %v393, %v383
        %v395 = vadd.s32 %v394, %v385
        %v396 = vmul.u32 %v351, %v342
        %v397 = vadd.s32 %v373, %v392
        %vm398 = vc.u32 %v373, %v392
        %v399 = vadd.s32 %v395, 1
        %v400 = vsel %vm398, %v399, %v395
        %v401 = vadd.s32 %v396, %v400
        %v402 = vadd.s32 %v401, 536870912
        %v403 = vshrl.u32 %v402, 30
        %v404 = vshll.u32 %v403, 30
        %v405 = vsub.s32 %v401, %v404
        %vm406 = vcmp.lt.s32.totalorder %v405, 0
        %v407 = vsub.s32 0, %v405
        %v408 = vsel %vm406, %v407, %v405
        %v409 = vclz %v408
        %v410 = vsub.s32 %v409, 2
        %vm411 = vcmp.gt.s32.totalorder 0, %v410
        %v412 = vsel %vm411, 0, %v410
        %v413 = vsub.s32 32, %v412
        %v414 = vshll.u32 %v405, %v412
        %v415 = vshrl.u32 %v397, %v413
        %v416 = vor.u32 %v414, %v415
        %v417 = vsub.s32 4294967266, %v412
        %v418 = vadd.s32 %v417, 127
        %v419 = vshll.u32 %v418, 23
        %v420 = vor.u32 4788187, %v419
        %v421 = vand.u32 2147483647, %v420
        %v423 = vcvt.s32.f32 %v416
        %v424 = vmul.f32 %v423, %v421
        %v425 = vxor.u32 %v424, 2147483648
        %v426 = vsel %vm305, %v425, %v424
        %v427 = vsub.s32 4, %v403
        %v428 = vsel %vm305, %v427, %v403
        %v429 = vsel %vm304, %v145, %v426
        %v430 = vsel %vm304, 0, %v428
        %v431 = vmul.f32 %v429, %v429
        %v432 = vmul.f32 %v431, -0.001358992
        %v433 = vadd.f32 %v432, 0.041655596
        %v434 = vmul.f32 %v431, %v433
        %v435 = vadd.f32 %v434, -0.4999988
        %v436 = vmul.f32 %v431, %v435
        %v437 = vadd.f32 1.0, %v436
        %v438 = vmul.f32 %v429, %v429
        %v439 = vmul.f32 %v438, -0.00019511016
        %v440 = vadd.f32 %v439, 0.008332121
        %v441 = vmul.f32 %v438, %v440
        %v442 = vadd.f32 %v441, -0.16666654
        %v443 = vmul.f32 %v438, %v442
        %v444 = vadd.f32 %v443, 1.0
        %v445 = vmul.f32 %v444, %v429
        %vm446 = vweird.f32 %v145
        %v447 = vadd.s32 %v430, 3
        %v448 = vand.u32 %v447, 3
        %vm449 = vcmp.lt.s32.totalorder %v448, 2
        %vm450 = vcmp.eq.s32.totalorder %v448, 0
        %v451 = vxor.u32 %v445, 2147483648
        %v452 = vsel %vm450, %v437, %v451
        %vm453 = vcmp.eq.s32.totalorder %v448, 2
        %v454 = vxor.u32 %v437, 2147483648
        %v455 = vsel %vm453, %v454, %v445
        %v456 = vsel %vm449, %v452, %v455
        %v457 = vsel %vm446, nan, %v456
        %v458 = vand.u32 2147483647, %v147
        %vm459 = vcmp.le.f32.partialorder %v458, 0.7853982
        %vm460 = vcmp.lt.s32.totalorder %v147, 0
        %v461 = vand.u32 %v147, 2139095040
        %v462 = vshrl.u32 %v461, 23
        %v463 = vsub.s32 %v462, 127
        %v464 = vand.u32 2147483647, %v147
        %v465 = vand.u32 %v464, 8388607
        %v466 = vor.u32 %v465, 8388608
        %v467 = vsub.s32 0, %v466
        %v468 = vadd.s32 %v463, 1
        %vm469 = vcmp.gt.s32.totalorder %v468, 0
        %v470 = vsel %vm469, %v468, 0
        %v471 = vshrl.u32 %v470, 5
        %v472 = vand.u32 %v470, 31
        %v473 = vsub.s32 32, %v472
        %v474 = vshrl.u32 683565275, %v473
        %v475 = vshll.u32 683565275, %v472
        %v476 = vshrl.u32 2475754826, %v473
        %v477 = vor.u32 %v475, %v476
        %v478 = vshll.u32 2475754826, %v472
        %v479 = vshrl.u32 2131351028, %v473
        %v480 = vor.u32 %v478, %v479
        %v481 = vshll.u32 2131351028, %v472
        %v482 = vshrl.u32 2102212464, %v473
        %v483 = vor.u32 %v481, %v482
        %v484 = vshll.u32 2102212464, %v472
        %v485 = vshrl.u32 920167782, %v473
        %v486 = vor.u32 %v484, %v485
        %v487 = vshll.u32 920167782, %v472
        %v488 = vshrl.u32 1326507024, %v473
        %v489 = vor.u32 %v487, %v488
        %vm490 = vcmp.lt.s32.totalorder %v471, 1
        %vm491 = vcmp.lt.s32.totalorder %v471, 2
        %vm492 = vcmp.lt.s32.totalorder %v471, 3
        %vm493 = vcmp.lt.s32.totalorder %v471, 4
        %v494 = vsel %vm490, %v474, %v477
        %v495 = vsel %vm493, %v483, 2102212464
        %v496 = vsel %vm492, %v480, %v495
        %v497 = vsel %vm491, %v494, %v496
        %v498 = vsel %vm490, %v477, %v480
        %v499 = vsel %vm493, %v486, 920167782
        %v500 = vsel %vm492, %v483, %v499
        %v501 = vsel %vm491, %v498, %v500
        %v502 = vsel %vm490, %v480, %v483
        %v503 = vsel %vm493, %v489, 1326507024
        %v504 = vsel %vm492, %v486, %v503
        %v505 = vsel %vm491, %v502, %v504
        %v506 = vshll.u32 %v466, 8
        %v507 = vand.u32 %v506, 65535
        %v508 = vshrl.u32 %v506, 16
        %v509 = vand.u32 %v505, 65535
        %v510 = vshrl.u32 %v505, 16
        %v511 = vmul.u32 %v507, %v509
        %v512 = vmul.u32 %v507, %v510
        %v513 = vmul.u32 %v508, %v509
        %v514 = vmul.u32 %v508, %v510
        %v515 = vshll.u32 %v512, 16
        %v516 = vshrl.u32 %v512, 16
        %v517 = vshll.u32 %v513, 16
        %v518 = vshrl.u32 %v513, 16
        %vm519 = vc.u32 %v511, %v515
        %v520 = vsel %vm519, 1, 0
        %v521 = vadd.s32 %v511, %v515
        %v522 = vadd.s32 %v514, %v520
        %vm523 = vc.u32 %v521, %v517
        %v524 = vsel %vm523, 1, 0
        %v525 = vadd.s32 %v521, %v517
        %v526 = vadd.s32 %v522, %v524
        %v527 = vadd.s32 %v526, %v516
        %v528 = vadd.s32 %v527, %v518
        %v529 = vand.u32 %v506, 65535
        %v530 = vshrl.u32 %v506, 16
        %v531 = vand.u32 %v501, 65535
        %v532 = vshrl.u32 %v501, 16
        %v533 = vmul.u32 %v529, %v531
        %v534 = vmul.u32 %v529, %v532
        %v535 = vmul.u32 %v530, %v531
        %v536 = vmul.u32 %v530, %v532
        %v537 = vshll.u32 %v534, 16
        %v538 = vshrl.u32 %v534, 16
        %v539 = vshll.u32 %v535, 16
        %v540 = vshrl.u32 %v535, 16
        %vm541 = vc.u32 %v533, %v537
        %v542 = vsel %vm541, 1, 0
        %v543 = vadd.s32 %v533, %v537
        %v544 = vadd.s32 %v536, %v542
        %vm545 = vc.u32 %v543, %v539
        %v546 = vsel %vm545, 1, 0
        %v547 = vadd.s32 %v543, %v539
        %v548 = vadd.s32 %v544, %v546
        %v549 = vadd.s32 %v548, %v538
        %v550 = vadd.s32 %v549, %v540
        %v551 = vmul.u32 %v506, %v497
        %v552 = vadd.s32 %v528, %v547
        %vm553 = vc.u32 %v528, %v547
        %v554 = vadd.s32 %v550, 1
        %v555 = vsel %vm553, %v554, %v550
        %v556 = vadd.s32 %v551, %v555
        %v557 = vadd.s32 %v556, 536870912
        %v558 = vshrl.u32 %v557, 30
        %v559 = vshll.u32 %v558, 30
        %v560 = vsub.s32 %v556, %v559
        %vm561 = vcmp.lt.s32.totalorder %v560, 0
        %v562 = vsub.s32 0, %v560
        %v563 = vsel %vm561, %v562, %v560
        %v564 = vclz %v563
        %v565 = vsub.s32 %v564, 2
        %vm566 = vcmp.gt.s32.totalorder 0, %v565
        %v567 = vsel %vm566, 0, %v565
        %v568 = vsub.s32 32, %v567
        %v569 = vshll.u32 %v560, %v567
        %v570 = vshrl.u32 %v552, %v568
        %v571 = vor.u32 %v569, %v570
        %v572 = vsub.s32 4294967266, %v567
        %v573 = vadd.s32 %v572, 127
        %v574 = vshll.u32 %v573, 23
        %v575 = vor.u32 4788187, %v574
        %v576 = vand.u32 2147483647, %v575
        %v578 = vcvt.s32.f32 %v571
        %v579 = vmul.f32 %v578, %v576
        %v580 = vxor.u32 %v579, 2147483648
        %v581 = vsel %vm460, %v580, %v579
        %v582 = vsub.s32 4, %v558
        %v583 = vsel %vm460, %v582, %v558
        %v584 = vsel %vm459, %v147, %v581
        %v585 = vsel %vm459, 0, %v583
        %v586 = vmul.f32 %v584, %v584
        %v587 = vmul.f32 %v586, -0.001358992
        %v588 = vadd.f32 %v587, 0.041655596
        %v589 = vmul.f32 %v586, %v588
        %v590 = vadd.f32 %v589, -0.4999988
        %v591 = vmul.f32 %v586, %v590
        %v592 = vadd.f32 1.0, %v591
        %v593 = vmul.f32 %v584, %v584
        %v594 = vmul.f32 %v593, -0.00019511016
        %v595 = vadd.f32 %v594, 0.008332121
        %v596 = vmul.f32 %v593, %v595
        %v597 = vadd.f32 %v596, -0.16666654
        %v598 = vmul.f32 %v593, %v597
        %v599 = vadd.f32 %v598, 1.0
        %v600 = vmul.f32 %v599, %v584
        %vm601 = vweird.f32 %v147
        %v602 = vadd.s32 %v585, 3
        %v603 = vand.u32 %v602, 3
        %vm604 = vcmp.lt.s32.totalorder %v603, 2
        %vm605 = vcmp.eq.s32.totalorder %v603, 0
        %v606 = vxor.u32 %v600, 2147483648
        %v607 = vsel %vm605, %v592, %v606
        %vm608 = vcmp.eq.s32.totalorder %v603, 2
        %v609 = vxor.u32 %v592, 2147483648
        %v610 = vsel %vm608, %v609, %v600
        %v611 = vsel %vm604, %v607, %v610
        %v612 = vsel %vm601, nan, %v611
        %v613 = vand.u32 2147483647, %v143
        %vm614 = vcmp.le.f32.partialorder %v613, 0.7853982
        %vm615 = vcmp.lt.s32.totalorder %v143, 0
        %v616 = vand.u32 %v143, 2139095040
        %v617 = vshrl.u32 %v616, 23
        %v618 = vsub.s32 %v617, 127
        %v619 = vand.u32 2147483647, %v143
        %v620 = vand.u32 %v619, 8388607
        %v621 = vor.u32 %v620, 8388608
        %v622 = vsub.s32 0, %v621
        %v623 = vadd.s32 %v618, 1
        %vm624 = vcmp.gt.s32.totalorder %v623, 0
        %v625 = vsel %vm624, %v623, 0
        %v626 = vshrl.u32 %v625, 5
        %v627 = vand.u32 %v625, 31
        %v628 = vsub.s32 32, %v627
        %v629 = vshrl.u32 683565275, %v628
        %v630 = vshll.u32 683565275, %v627
        %v631 = vshrl.u32 2475754826, %v628
        %v632 = vor.u32 %v630, %v631
        %v633 = vshll.u32 2475754826, %v627
        %v634 = vshrl.u32 2131351028, %v628
        %v635 = vor.u32 %v633, %v634
        %v636 = vshll.u32 2131351028, %v627
        %v637 = vshrl.u32 2102212464, %v628
        %v638 = vor.u32 %v636, %v637
        %v639 = vshll.u32 2102212464, %v627
        %v640 = vshrl.u32 920167782, %v628
        %v641 = vor.u32 %v639, %v640
        %v642 = vshll.u32 920167782, %v627
        %v643 = vshrl.u32 1326507024, %v628
        %v644 = vor.u32 %v642, %v643
        %vm645 = vcmp.lt.s32.totalorder %v626, 1
        %vm646 = vcmp.lt.s32.totalorder %v626, 2
        %vm647 = vcmp.lt.s32.totalorder %v626, 3
        %vm648 = vcmp.lt.s32.totalorder %v626, 4
        %v649 = vsel %vm645, %v629, %v632
        %v650 = vsel %vm648, %v638, 2102212464
        %v651 = vsel %vm647, %v635, %v650
        %v652 = vsel %vm646, %v649, %v651
        %v653 = vsel %vm645, %v632, %v635
        %v654 = vsel %vm648, %v641, 920167782
        %v655 = vsel %vm647, %v638, %v654
        %v656 = vsel %vm646, %v653, %v655
        %v657 = vsel %vm645, %v635, %v638
        %v658 = vsel %vm648, %v644, 1326507024
        %v659 = vsel %vm647, %v641, %v658
        %v660 = vsel %vm646, %v657, %v659
        %v661 = vshll.u32 %v621, 8
        %v662 = vand.u32 %v661, 65535
        %v663 = vshrl.u32 %v661, 16
        %v664 = vand.u32 %v660, 65535
        %v665 = vshrl.u32 %v660, 16
        %v666 = vmul.u32 %v662, %v664
        %v667 = vmul.u32 %v662, %v665
        %v668 = vmul.u32 %v663, %v664
        %v669 = vmul.u32 %v663, %v665
        %v670 = vshll.u32 %v667, 16
        %v671 = vshrl.u32 %v667, 16
        %v672 = vshll.u32 %v668, 16
        %v673 = vshrl.u32 %v668, 16
        %vm674 = vc.u32 %v666, %v670
        %v675 = vsel %vm674, 1, 0
        %v676 = vadd.s32 %v666, %v670
        %v677 = vadd.s32 %v669, %v675
        %vm678 = vc.u32 %v676, %v672
        %v679 = vsel %vm678, 1, 0
        %v680 = vadd.s32 %v676, %v672
        %v681 = vadd.s32 %v677, %v679
        %v682 = vadd.s32 %v681, %v671
        %v683 = vadd.s32 %v682, %v673
        %v684 = vand.u32 %v661, 65535
        %v685 = vshrl.u32 %v661, 16
        %v686 = vand.u32 %v656, 65535
        %v687 = vshrl.u32 %v656, 16
        %v688 = vmul.u32 %v684, %v686
        %v689 = vmul.u32 %v684, %v687
        %v690 = vmul.u32 %v685, %v686
        %v691 = vmul.u32 %v685, %v687
        %v692 = vshll.u32 %v689, 16
        %v693 = vshrl.u32 %v689, 16
        %v694 = vshll.u32 %v690, 16
        %v695 = vshrl.u32 %v690, 16
        %vm696 = vc.u32 %v688, %v692
        %v697 = vsel %vm696, 1, 0
        %v698 = vadd.s32 %v688, %v692
        %v699 = vadd.s32 %v691, %v697
        %vm700 = vc.u32 %v698, %v694
        %v701 = vsel %vm700, 1, 0
        %v702 = vadd.s32 %v698, %v694
        %v703 = vadd.s32 %v699, %v701
        %v704 = vadd.s32 %v703, %v693
        %v705 = vadd.s32 %v704, %v695
        %v706 = vmul.u32 %v661, %v652
        %v707 = vadd.s32 %v683, %v702
        %vm708 = vc.u32 %v683, %v702
        %v709 = vadd.s32 %v705, 1
        %v710 = vsel %vm708, %v709, %v705
        %v711 = vadd.s32 %v706, %v710
        %v712 = vadd.s32 %v711, 536870912
        %v713 = vshrl.u32 %v712, 30
        %v714 = vshll.u32 %v713, 30
        %v715 = vsub.s32 %v711, %v714
        %vm716 = vcmp.lt.s32.totalorder %v715, 0
        %v717 = vsub.s32 0, %v715
        %v718 = vsel %vm716, %v717, %v715
        %v719 = vclz %v718
        %v720 = vsub.s32 %v719, 2
        %vm721 = vcmp.gt.s32.totalorder 0, %v720
        %v722 = vsel %vm721, 0, %v720
        %v723 = vsub.s32 32, %v722
        %v724 = vshll.u32 %v715, %v722
        %v725 = vshrl.u32 %v707, %v723
        %v726 = vor.u32 %v724, %v725
        %v727 = vsub.s32 4294967266, %v722
        %v728 = vadd.s32 %v727, 127
        %v729 = vshll.u32 %v728, 23
        %v730 = vor.u32 4788187, %v729
        %v731 = vand.u32 2147483647, %v730
        %v733 = vcvt.s32.f32 %v726
        %v734 = vmul.f32 %v733, %v731
        %v735 = vxor.u32 %v734, 2147483648
        %v736 = vsel %vm615, %v735, %v734
        %v737 = vsub.s32 4, %v713
        %v738 = vsel %vm615, %v737, %v713
        %v739 = vsel %vm614, %v143, %v736
        %v740 = vsel %vm614, 0, %v738
        %v741 = vmul.f32 %v739, %v739
        %v742 = vmul.f32 %v741, -0.001358992
        %v743 = vadd.f32 %v742, 0.041655596
        %v744 = vmul.f32 %v741, %v743
        %v745 = vadd.f32 %v744, -0.4999988
        %v746 = vmul.f32 %v741, %v745
        %v747 = vadd.f32 1.0, %v746
        %v748 = vmul.f32 %v739, %v739
        %v749 = vmul.f32 %v748, -0.00019511016
        %v750 = vadd.f32 %v749, 0.008332121
        %v751 = vmul.f32 %v748, %v750
        %v752 = vadd.f32 %v751, -0.16666654
        %v753 = vmul.f32 %v748, %v752
        %v754 = vadd.f32 %v753, 1.0
        %v755 = vmul.f32 %v754, %v739
        %vm756 = vweird.f32 %v143
        %v757 = vand.u32 %v740, 3
        %vm758 = vcmp.lt.s32.totalorder %v757, 2
        %vm759 = vcmp.eq.s32.totalorder %v757, 0
        %v760 = vxor.u32 %v755, 2147483648
        %v761 = vsel %vm759, %v747, %v760
        %vm762 = vcmp.eq.s32.totalorder %v757, 2
        %v763 = vxor.u32 %v747, 2147483648
        %v764 = vsel %vm762, %v763, %v755
        %v765 = vsel %vm758, %v761, %v764
        %v766 = vsel %vm756, nan, %v765
        %v767 = vand.u32 2147483647, %v145
        %vm768 = vcmp.le.f32.partialorder %v767, 0.7853982
        %vm769 = vcmp.lt.s32.totalorder %v145, 0
        %v770 = vand.u32 %v145, 2139095040
        %v771 = vshrl.u32 %v770, 23
        %v772 = vsub.s32 %v771, 127
        %v773 = vand.u32 2147483647, %v145
        %v774 = vand.u32 %v773, 8388607
        %v775 = vor.u32 %v774, 8388608
        %v776 = vsub.s32 0, %v775
        %v777 = vadd.s32 %v772, 1
        %vm778 = vcmp.gt.s32.totalorder %v777, 0
        %v779 = vsel %vm778, %v777, 0
        %v780 = vshrl.u32 %v779, 5
        %v781 = vand.u32 %v779, 31
        %v782 = vsub.s32 32, %v781
        %v783 = vshrl.u32 683565275, %v782
        %v784 = vshll.u32 683565275, %v781
        %v785 = vshrl.u32 2475754826, %v782
        %v786 = vor.u32 %v784, %v785
        %v787 = vshll.u32 2475754826, %v781
        %v788 = vshrl.u32 2131351028, %v782
        %v789 = vor.u32 %v787, %v788
        %v790 = vshll.u32 2131351028, %v781
        %v791 = vshrl.u32 2102212464, %v782
        %v792 = vor.u32 %v790, %v791
        %v793 = vshll.u32 2102212464, %v781
        %v794 = vshrl.u32 920167782, %v782
        %v795 = vor.u32 %v793, %v794
        %v796 = vshll.u32 920167782, %v781
        %v797 = vshrl.u32 1326507024, %v782
        %v798 = vor.u32 %v796, %v797
        %vm799 = vcmp.lt.s32.totalorder %v780, 1
        %vm800 = vcmp.lt.s32.totalorder %v780, 2
        %vm801 = vcmp.lt.s32.totalorder %v780, 3
        %vm802 = vcmp.lt.s32.totalorder %v780, 4
        %v803 = vsel %vm799, %v783, %v786
        %v804 = vsel %vm802, %v792, 2102212464
        %v805 = vsel %vm801, %v789, %v804
        %v806 = vsel %vm800, %v803, %v805
        %v807 = vsel %vm799, %v786, %v789
        %v808 = vsel %vm802, %v795, 920167782
        %v809 = vsel %vm801, %v792, %v808
        %v810 = vsel %vm800, %v807, %v809
        %v811 = vsel %vm799, %v789, %v792
        %v812 = vsel %vm802, %v798, 1326507024
        %v813 = vsel %vm801, %v795, %v812
        %v814 = vsel %vm800, %v811, %v813
        %v815 = vshll.u32 %v775, 8
        %v816 = vand.u32 %v815, 65535
        %v817 = vshrl.u32 %v815, 16
        %v818 = vand.u32 %v814, 65535
        %v819 = vshrl.u32 %v814, 16
        %v820 = vmul.u32 %v816, %v818
        %v821 = vmul.u32 %v816, %v819
        %v822 = vmul.u32 %v817, %v818
        %v823 = vmul.u32 %v817, %v819
        %v824 = vshll.u32 %v821, 16
        %v825 = vshrl.u32 %v821, 16
        %v826 = vshll.u32 %v822, 16
        %v827 = vshrl.u32 %v822, 16
        %vm828 = vc.u32 %v820, %v824
        %v829 = vsel %vm828, 1, 0
        %v830 = vadd.s32 %v820, %v824
        %v831 = vadd.s32 %v823, %v829
        %vm832 = vc.u32 %v830, %v826
        %v833 = vsel %vm832, 1, 0
        %v834 = vadd.s32 %v830, %v826
        %v835 = vadd.s32 %v831, %v833
        %v836 = vadd.s32 %v835, %v825
        %v837 = vadd.s32 %v836, %v827
        %v838 = vand.u32 %v815, 65535
        %v839 = vshrl.u32 %v815, 16
        %v840 = vand.u32 %v810, 65535
        %v841 = vshrl.u32 %v810, 16
        %v842 = vmul.u32 %v838, %v840
        %v843 = vmul.u32 %v838, %v841
        %v844 = vmul.u32 %v839, %v840
        %v845 = vmul.u32 %v839, %v841
        %v846 = vshll.u32 %v843, 16
        %v847 = vshrl.u32 %v843, 16
        %v848 = vshll.u32 %v844, 16
        %v849 = vshrl.u32 %v844, 16
        %vm850 = vc.u32 %v842, %v846
        %v851 = vsel %vm850, 1, 0
        %v852 = vadd.s32 %v842, %v846
        %v853 = vadd.s32 %v845, %v851
        %vm854 = vc.u32 %v852, %v848
        %v855 = vsel %vm854, 1, 0
        %v856 = vadd.s32 %v852, %v848
        %v857 = vadd.s32 %v853, %v855
        %v858 = vadd.s32 %v857, %v847
        %v859 = vadd.s32 %v858, %v849
        %v860 = vmul.u32 %v815, %v806
        %v861 = vadd.s32 %v837, %v856
        %vm862 = vc.u32 %v837, %v856
        %v863 = vadd.s32 %v859, 1
        %v864 = vsel %vm862, %v863, %v859
        %v865 = vadd.s32 %v860, %v864
        %v866 = vadd.s32 %v865, 536870912
        %v867 = vshrl.u32 %v866, 30
        %v868 = vshll.u32 %v867, 30
        %v869 = vsub.s32 %v865, %v868
        %vm870 = vcmp.lt.s32.totalorder %v869, 0
        %v871 = vsub.s32 0, %v869
        %v872 = vsel %vm870, %v871, %v869
        %v873 = vclz %v872
        %v874 = vsub.s32 %v873, 2
        %vm875 = vcmp.gt.s32.totalorder 0, %v874
        %v876 = vsel %vm875, 0, %v874
        %v877 = vsub.s32 32, %v876
        %v878 = vshll.u32 %v869, %v876
        %v879 = vshrl.u32 %v861, %v877
        %v880 = vor.u32 %v878, %v879
        %v881 = vsub.s32 4294967266, %v876
        %v882 = vadd.s32 %v881, 127
        %v883 = vshll.u32 %v882, 23
        %v884 = vor.u32 4788187, %v883
        %v885 = vand.u32 2147483647, %v884
        %v887 = vcvt.s32.f32 %v880
        %v888 = vmul.f32 %v887, %v885
        %v889 = vxor.u32 %v888, 2147483648
        %v890 = vsel %vm769, %v889, %v888
        %v891 = vsub.s32 4, %v867
        %v892 = vsel %vm769, %v891, %v867
        %v893 = vsel %vm768, %v145, %v890
        %v894 = vsel %vm768, 0, %v892
        %v895 = vmul.f32 %v893, %v893
        %v896 = vmul.f32 %v895, -0.001358992
        %v897 = vadd.f32 %v896, 0.041655596
        %v898 = vmul.f32 %v895, %v897
        %v899 = vadd.f32 %v898, -0.4999988
        %v900 = vmul.f32 %v895, %v899
        %v901 = vadd.f32 1.0, %v900
        %v902 = vmul.f32 %v893, %v893
        %v903 = vmul.f32 %v902, -0.00019511016
        %v904 = vadd.f32 %v903, 0.008332121
        %v905 = vmul.f32 %v902, %v904
        %v906 = vadd.f32 %v905, -0.16666654
        %v907 = vmul.f32 %v902, %v906
        %v908 = vadd.f32 %v907, 1.0
        %v909 = vmul.f32 %v908, %v893
        %vm910 = vweird.f32 %v145
        %v911 = vand.u32 %v894, 3
        %vm912 = vcmp.lt.s32.totalorder %v911, 2
        %vm913 = vcmp.eq.s32.totalorder %v911, 0
        %v914 = vxor.u32 %v909, 2147483648
        %v915 = vsel %vm913, %v901, %v914
        %vm916 = vcmp.eq.s32.totalorder %v911, 2
        %v917 = vxor.u32 %v901, 2147483648
        %v918 = vsel %vm916, %v917, %v909
        %v919 = vsel %vm912, %v915, %v918
        %v920 = vsel %vm910, nan, %v919
        %v921 = vand.u32 2147483647, %v147
        %vm922 = vcmp.le.f32.partialorder %v921, 0.7853982
        %vm923 = vcmp.lt.s32.totalorder %v147, 0
        %v924 = vand.u32 %v147, 2139095040
        %v925 = vshrl.u32 %v924, 23
        %v926 = vsub.s32 %v925, 127
        %v927 = vand.u32 2147483647, %v147
        %v928 = vand.u32 %v927, 8388607
        %v929 = vor.u32 %v928, 8388608
        %v930 = vsub.s32 0, %v929
        %v931 = vadd.s32 %v926, 1
        %vm932 = vcmp.gt.s32.totalorder %v931, 0
        %v933 = vsel %vm932, %v931, 0
        %v934 = vshrl.u32 %v933, 5
        %v935 = vand.u32 %v933, 31
        %v936 = vsub.s32 32, %v935
        %v937 = vshrl.u32 683565275, %v936
        %v938 = vshll.u32 683565275, %v935
        %v939 = vshrl.u32 2475754826, %v936
        %v940 = vor.u32 %v938, %v939
        %v941 = vshll.u32 2475754826, %v935
        %v942 = vshrl.u32 2131351028, %v936
        %v943 = vor.u32 %v941, %v942
        %v944 = vshll.u32 2131351028, %v935
        %v945 = vshrl.u32 2102212464, %v936
        %v946 = vor.u32 %v944, %v945
        %v947 = vshll.u32 2102212464, %v935
        %v948 = vshrl.u32 920167782, %v936
        %v949 = vor.u32 %v947, %v948
        %v950 = vshll.u32 920167782, %v935
        %v951 = vshrl.u32 1326507024, %v936
        %v952 = vor.u32 %v950, %v951
        %vm953 = vcmp.lt.s32.totalorder %v934, 1
        %vm954 = vcmp.lt.s32.totalorder %v934, 2
        %vm955 = vcmp.lt.s32.totalorder %v934, 3
        %vm956 = vcmp.lt.s32.totalorder %v934, 4
        %v957 = vsel %vm953, %v937, %v940
        %v958 = vsel %vm956, %v946, 2102212464
        %v959 = vsel %vm955, %v943, %v958
        %v960 = vsel %vm954, %v957, %v959
        %v961 = vsel %vm953, %v940, %v943
        %v962 = vsel %vm956, %v949, 920167782
        %v963 = vsel %vm955, %v946, %v962
        %v964 = vsel %vm954, %v961, %v963
        %v965 = vsel %vm953, %v943, %v946
        %v966 = vsel %vm956, %v952, 1326507024
        %v967 = vsel %vm955, %v949, %v966
        %v968 = vsel %vm954, %v965, %v967
        %v969 = vshll.u32 %v929, 8
        %v970 = vand.u32 %v969, 65535
        %v971 = vshrl.u32 %v969, 16
        %v972 = vand.u32 %v968, 65535
        %v973 = vshrl.u32 %v968, 16
        %v974 = vmul.u32 %v970, %v972
        %v975 = vmul.u32 %v970, %v973
        %v976 = vmul.u32 %v971, %v972
        %v977 = vmul.u32 %v971, %v973
        %v978 = vshll.u32 %v975, 16
        %v979 = vshrl.u32 %v975, 16
        %v980 = vshll.u32 %v976, 16
        %v981 = vshrl.u32 %v976, 16
        %vm982 = vc.u32 %v974, %v978
        %v983 = vsel %vm982, 1, 0
        %v984 = vadd.s32 %v974, %v978
        %v985 = vadd.s32 %v977, %v983
        %vm986 = vc.u32 %v984, %v980
        %v987 = vsel %vm986, 1, 0
        %v988 = vadd.s32 %v984, %v980
        %v989 = vadd.s32 %v985, %v987
        %v990 = vadd.s32 %v989, %v979
        %v991 = vadd.s32 %v990, %v981
        %v992 = vand.u32 %v969, 65535
        %v993 = vshrl.u32 %v969, 16
        %v994 = vand.u32 %v964, 65535
        %v995 = vshrl.u32 %v964, 16
        %v996 = vmul.u32 %v992, %v994
        %v997 = vmul.u32 %v992, %v995
        %v998 = vmul.u32 %v993, %v994
        %v999 = vmul.u32 %v993, %v995
        %v1000 = vshll.u32 %v997, 16
        %v1001 = vshrl.u32 %v997, 16
        %v1002 = vshll.u32 %v998, 16
        %v1003 = vshrl.u32 %v998, 16
        %vm1004 = vc.u32 %v996, %v1000
        %v1005 = vsel %vm1004, 1, 0
        %v1006 = vadd.s32 %v996, %v1000
        %v1007 = vadd.s32 %v999, %v1005
        %vm1008 = vc.u32 %v1006, %v1002
        %v1009 = vsel %vm1008, 1, 0
        %v1010 = vadd.s32 %v1006, %v1002
        %v1011 = vadd.s32 %v1007, %v1009
        %v1012 = vadd.s32 %v1011, %v1001
        %v1013 = vadd.s32 %v1012, %v1003
        %v1014 = vmul.u32 %v969, %v960
        %v1015 = vadd.s32 %v991, %v1010
        %vm1016 = vc.u32 %v991, %v1010
        %v1017 = vadd.s32 %v1013, 1
        %v1018 = vsel %vm1016, %v1017, %v1013
        %v1019 = vadd.s32 %v1014, %v1018
        %v1020 = vadd.s32 %v1019, 536870912
        %v1021 = vshrl.u32 %v1020, 30
        %v1022 = vshll.u32 %v1021, 30
        %v1023 = vsub.s32 %v1019, %v1022
        %vm1024 = vcmp.lt.s32.totalorder %v1023, 0
        %v1025 = vsub.s32 0, %v1023
        %v1026 = vsel %vm1024, %v1025, %v1023
        %v1027 = vclz %v1026
        %v1028 = vsub.s32 %v1027, 2
        %vm1029 = vcmp.gt.s32.totalorder 0, %v1028
        %v1030 = vsel %vm1029, 0, %v1028
        %v1031 = vsub.s32 32, %v1030
        %v1032 = vshll.u32 %v1023, %v1030
        %v1033 = vshrl.u32 %v1015, %v1031
        %v1034 = vor.u32 %v1032, %v1033
        %v1035 = vsub.s32 4294967266, %v1030
        %v1036 = vadd.s32 %v1035, 127
        %v1037 = vshll.u32 %v1036, 23
        %v1038 = vor.u32 4788187, %v1037
        %v1039 = vand.u32 2147483647, %v1038
        %v1041 = vcvt.s32.f32 %v1034
        %v1042 = vmul.f32 %v1041, %v1039
        %v1043 = vxor.u32 %v1042, 2147483648
        %v1044 = vsel %vm923, %v1043, %v1042
        %v1045 = vsub.s32 4, %v1021
        %v1046 = vsel %vm923, %v1045, %v1021
        %v1047 = vsel %vm922, %v147, %v1044
        %v1048 = vsel %vm922, 0, %v1046
        %v1049 = vmul.f32 %v1047, %v1047
        %v1050 = vmul.f32 %v1049, -0.001358992
        %v1051 = vadd.f32 %v1050, 0.041655596
        %v1052 = vmul.f32 %v1049, %v1051
        %v1053 = vadd.f32 %v1052, -0.4999988
        %v1054 = vmul.f32 %v1049, %v1053
        %v1055 = vadd.f32 1.0, %v1054
        %v1056 = vmul.f32 %v1047, %v1047
        %v1057 = vmul.f32 %v1056, -0.00019511016
        %v1058 = vadd.f32 %v1057, 0.008332121
        %v1059 = vmul.f32 %v1056, %v1058
        %v1060 = vadd.f32 %v1059, -0.16666654
        %v1061 = vmul.f32 %v1056, %v1060
        %v1062 = vadd.f32 %v1061, 1.0
        %v1063 = vmul.f32 %v1062, %v1047
        %vm1064 = vweird.f32 %v147
        %v1065 = vand.u32 %v1048, 3
        %vm1066 = vcmp.lt.s32.totalorder %v1065, 2
        %vm1067 = vcmp.eq.s32.totalorder %v1065, 0
        %v1068 = vxor.u32 %v1063, 2147483648
        %v1069 = vsel %vm1067, %v1055, %v1068
        %vm1070 = vcmp.eq.s32.totalorder %v1065, 2
        %v1071 = vxor.u32 %v1055, 2147483648
        %v1072 = vsel %vm1070, %v1071, %v1063
        %v1073 = vsel %vm1066, %v1069, %v1072
        %v1074 = vsel %vm1064, nan, %v1073
        %1075 = vxpose.xlu0.b32.start [1/16] %v137, 128
        %1076 = vxpose.xlu0.b32.cont [2/16] 0.0, 128
        %1077 = vxpose.xlu0.b32.cont [3/16] 0.0, 128
        %1078 = vxpose.xlu0.b32.cont [4/16] 0.0, 128
        %1079 = vxpose.xlu0.b32.cont [5/16] 0.0, 128
        %1080 = vxpose.xlu0.b32.cont [6/16] 0.0, 128
        %1081 = vxpose.xlu0.b32.cont [7/16] 0.0, 128
        %1082 = vxpose.xlu0.b32.cont [8/16] 0.0, 128
        %1083 = vxpose.xlu0.b32.cont [9/16] 0.0, 128
        %1084 = vxpose.xlu0.b32.cont [10/16] 0.0, 128
        %1085 = vxpose.xlu0.b32.cont [11/16] 0.0, 128
        %1086 = vxpose.xlu0.b32.cont [12/16] 0.0, 128
        %1087 = vxpose.xlu0.b32.cont [13/16] 0.0, 128
        %1088 = vxpose.xlu0.b32.cont [14/16] 0.0, 128
        %1089 = vxpose.xlu0.b32.cont [15/16] 0.0, 128
        %1090 = vxpose.xlu0.b32.end [16/16] 0.0, 128
        %v1091 = vpop.trf.xlu0
        %v1092 = vpop.trf.xlu0
        %v1093 = vpop.trf.xlu0
        %v1094 = vpop.trf.xlu0
        %v1095 = vpop.trf.xlu0
        %v1096 = vpop.trf.xlu0
        %v1097 = vpop.trf.xlu0
        %v1098 = vpop.trf.xlu0
        %v1099 = vpop.trf.xlu0
        %v1100 = vpop.trf.xlu0
        %v1101 = vpop.trf.xlu0
        %v1102 = vpop.trf.xlu0
        %v1103 = vpop.trf.xlu0
        %v1104 = vpop.trf.xlu0
        %v1105 = vpop.trf.xlu0
        %v1106 = vpop.trf.xlu0
        %1107 = vxpose.xlu0.b32.start [1/16] %v302, 128
        %1108 = vxpose.xlu0.b32.cont [2/16] %v457, 128
        %1109 = vxpose.xlu0.b32.cont [3/16] %v612, 128
        %1110 = vxpose.xlu0.b32.cont [4/16] %v766, 128
        %1111 = vxpose.xlu0.b32.cont [5/16] %v920, 128
        %1112 = vxpose.xlu0.b32.cont [6/16] %v1074, 128
        %1113 = vxpose.xlu0.b32.cont [7/16] 0.0, 128
        %1114 = vxpose.xlu0.b32.cont [8/16] 0.0, 128
        %1115 = vxpose.xlu0.b32.cont [9/16] 0.0, 128
        %1116 = vxpose.xlu0.b32.cont [10/16] 0.0, 128
        %1117 = vxpose.xlu0.b32.cont [11/16] 0.0, 128
        %1118 = vxpose.xlu0.b32.cont [12/16] 0.0, 128
        %1119 = vxpose.xlu0.b32.cont [13/16] 0.0, 128
        %1120 = vxpose.xlu0.b32.cont [14/16] 0.0, 128
        %1121 = vxpose.xlu0.b32.cont [15/16] 0.0, 128
        %1122 = vxpose.xlu0.b32.end [16/16] 0.0, 128
        %v1123 = vpop.trf.xlu0
        %v1124 = vpop.trf.xlu0
        %v1125 = vpop.trf.xlu0
        %v1126 = vpop.trf.xlu0
        %v1127 = vpop.trf.xlu0
        %v1128 = vpop.trf.xlu0
        %v1129 = vpop.trf.xlu0
        %v1130 = vpop.trf.xlu0
        %v1131 = vpop.trf.xlu0
        %v1132 = vpop.trf.xlu0
        %v1133 = vpop.trf.xlu0
        %v1134 = vpop.trf.xlu0
        %v1135 = vpop.trf.xlu0
        %v1136 = vpop.trf.xlu0
        %v1137 = vpop.trf.xlu0
        %v1138 = vpop.trf.xlu0
        %vm1139 = vcmask 23552
        %1140 = vst.msk [vmem:[%s135] sm:$0xff] %vm1139, %v1091
        %1141 = vst.msk [vmem:[%s135 + $0x8] sm:$0xff] %vm1139, %v1092
        %1142 = vst.msk [vmem:[%s135 + $0x10] sm:$0xff] %vm1139, %v1093
        %1143 = vst.msk [vmem:[%s135 + $0x18] sm:$0xff] %vm1139, %v1094
        %1144 = vst.msk [vmem:[%s135 + $0x20] sm:$0xff] %vm1139, %v1095
        %1145 = vst.msk [vmem:[%s135 + $0x28] sm:$0xff] %vm1139, %v1096
        %1146 = vst.msk [vmem:[%s135 + $0x30] sm:$0xff] %vm1139, %v1097
        %1147 = vst.msk [vmem:[%s135 + $0x38] sm:$0xff] %vm1139, %v1098
        %1148 = vst.msk [vmem:[%s135 + $0x40] sm:$0xff] %vm1139, %v1099
        %1149 = vst.msk [vmem:[%s135 + $0x48] sm:$0xff] %vm1139, %v1100
        %1150 = vst.msk [vmem:[%s135 + $0x50] sm:$0xff] %vm1139, %v1101
        %1151 = vst.msk [vmem:[%s135 + $0x58] sm:$0xff] %vm1139, %v1102
        %1152 = vst.msk [vmem:[%s135 + $0x60] sm:$0xff] %vm1139, %v1103
        %1153 = vst.msk [vmem:[%s135 + $0x68] sm:$0xff] %vm1139, %v1104
        %1154 = vst.msk [vmem:[%s135 + $0x70] sm:$0xff] %vm1139, %v1105
        %1155 = vst.msk [vmem:[%s135 + $0x78] sm:$0xff] %vm1139, %v1106
        %1172 = vrot.lane.b32.xlu0 %v1123, 3
        %v1173 = vpop.permute.xlu0 %1172
        %1174 = vrot.lane.b32.xlu0 %v1124, 3
        %v1175 = vpop.permute.xlu0 %1174
        %1176 = vrot.lane.b32.xlu0 %v1125, 3
        %v1177 = vpop.permute.xlu0 %1176
        %1178 = vrot.lane.b32.xlu0 %v1126, 3
        %v1179 = vpop.permute.xlu0 %1178
        %1180 = vrot.lane.b32.xlu0 %v1127, 3
        %v1181 = vpop.permute.xlu0 %1180
        %1182 = vrot.lane.b32.xlu0 %v1128, 3
        %v1183 = vpop.permute.xlu0 %1182
        %1184 = vrot.lane.b32.xlu0 %v1129, 3
        %v1185 = vpop.permute.xlu0 %1184
        %1186 = vrot.lane.b32.xlu0 %v1130, 3
        %v1187 = vpop.permute.xlu0 %1186
        %1188 = vrot.lane.b32.xlu0 %v1131, 3
        %v1189 = vpop.permute.xlu0 %1188
        %1190 = vrot.lane.b32.xlu0 %v1132, 3
        %v1191 = vpop.permute.xlu0 %1190
        %1192 = vrot.lane.b32.xlu0 %v1133, 3
        %v1193 = vpop.permute.xlu0 %1192
        %1194 = vrot.lane.b32.xlu0 %v1134, 3
        %v1195 = vpop.permute.xlu0 %1194
        %1196 = vrot.lane.b32.xlu0 %v1135, 3
        %v1197 = vpop.permute.xlu0 %1196
        %1198 = vrot.lane.b32.xlu0 %v1136, 3
        %v1199 = vpop.permute.xlu0 %1198
        %1200 = vrot.lane.b32.xlu0 %v1137, 3
        %v1201 = vpop.permute.xlu0 %1200
        %1202 = vrot.lane.b32.xlu0 %v1138, 3
        %v1203 = vpop.permute.xlu0 %1202
        %vm1220 = vcmask 416792
        %1221 = vst.msk [vmem:[%s135] sm:$0xff] %vm1220, %v1173
        %1222 = vst.msk [vmem:[%s135 + $0x8] sm:$0xff] %vm1220, %v1175
        %1223 = vst.msk [vmem:[%s135 + $0x10] sm:$0xff] %vm1220, %v1177
        %1224 = vst.msk [vmem:[%s135 + $0x18] sm:$0xff] %vm1220, %v1179
        %1225 = vst.msk [vmem:[%s135 + $0x20] sm:$0xff] %vm1220, %v1181
        %1226 = vst.msk [vmem:[%s135 + $0x28] sm:$0xff] %vm1220, %v1183
        %1227 = vst.msk [vmem:[%s135 + $0x30] sm:$0xff] %vm1220, %v1185
        %1228 = vst.msk [vmem:[%s135 + $0x38] sm:$0xff] %vm1220, %v1187
        %1229 = vst.msk [vmem:[%s135 + $0x40] sm:$0xff] %vm1220, %v1189
        %1230 = vst.msk [vmem:[%s135 + $0x48] sm:$0xff] %vm1220, %v1191
        %1231 = vst.msk [vmem:[%s135 + $0x50] sm:$0xff] %vm1220, %v1193
        %1232 = vst.msk [vmem:[%s135 + $0x58] sm:$0xff] %vm1220, %v1195
        %1233 = vst.msk [vmem:[%s135 + $0x60] sm:$0xff] %vm1220, %v1197
        %1234 = vst.msk [vmem:[%s135 + $0x68] sm:$0xff] %vm1220, %v1199
        %1235 = vst.msk [vmem:[%s135 + $0x70] sm:$0xff] %vm1220, %v1201
        %1236 = vst.msk [vmem:[%s135 + $0x78] sm:$0xff] %vm1220, %v1203
        %s1237 = smul.u32 16, %s15
        %p1238 = scmp.lt.s32.totalorder %s1237, 31
        %s1239 = scalar_select %p1238, %s1237, 31
        %s1240 = smul.addr %s1239, 8
        %s1241 = scalar_lea.vmem %s1, %s1240
        // Predicated region
        $region29: #{tpu_custom_call.1} parent=23 // pred_check
          %p1242 = pneg %p59
        $region30: #{tpu_custom_call.1} parent=23 // pred_check_branch
          %1244 = sbr.rel (%p1242) target = $region32
        $region31: #{tpu_custom_call.1} parent=23 // pred_region
          %s1245 = smul.u32 16, %s15
        $region32: #{tpu_custom_call.1} parent=23 // pred_fallthru
          _
      $region24: #{tpu_custom_call.1} parent=5 // pred_fallthru
        _
      %p1246 = scmp.le.s32.totalorder 2, %s10
      // Predicated region
      $region33: #{tpu_custom_call.1} parent=5 // pred_check
        %p1247 = pneg %p1246
      $region34: #{tpu_custom_call.1} parent=5 // pred_check_branch
        %1249 = sbr.rel (%p1247) target = $region36
      $region35: #{tpu_custom_call.1} parent=5 // pred_region
        %s1250 = ssub.s32 %s10, 2
        // Predicated region
        $region37: #{tpu_custom_call.1} parent=35 // pred_check
          %p1251 = pneg %p65
        $region38: #{tpu_custom_call.1} parent=35 // pred_check_branch
          %1253 = sbr.rel (%p1251) target = $region40
        $region39: #{tpu_custom_call.1} parent=35 // pred_region
          %s1254 = smul.u32 16, %s16
          %p1255 = scmp.lt.s32.totalorder %s1254, 31
          %s1256 = scalar_select %p1255, %s1254, 31
          %s1257 = smul.addr %s1256, 8
          %s1258 = scalar_lea.vmem %s1, %s1257
        $region40: #{tpu_custom_call.1} parent=35 // pred_fallthru
          _
      $region36: #{tpu_custom_call.1} parent=5 // pred_fallthru
        _
    $region6: #{tpu_custom_call.1} parent=1 // loop_footer
      %s14 = sadd.s32 1, %s10
    $region7: #{tpu_custom_call.1} parent=1 // loop_footer_branch
      %9 = sbr.rel target = $region3
    $region8: #{tpu_custom_call.1} parent=1 // loop_exit
      _
    %1259 = vsyncpa [#allocation3], 1
    %s1260 = scalar_lea.sflag [#allocation3], 1
    %1261 = vsyncpa %s1260, 1

// kernel: tpu_custom_call.1
$region0: #{tpu_custom_call.1}
  #allocation0 [shape = 'u32[]', space=smem, size = 0x4, offset = 0x4, fixed_abs, tag = 'smem constant byte address 0x4 - core index']
  #allocation1 [shape = 'u32[72,128]{1,0:T(1,128)}', space=vmem, size = 0x9000, scoped, tag = 'internal scratch']
  %s0 = inlined_call_operand.hbm [shape: f32[8,256], index: 0, kind: input, shape index: {}]
  %s1 = inlined_call_operand.hbm [shape: f32[56,256], index: 1, kind: output, shape index: {}]
  %s2 = sld [smem:[#allocation0]]
  $region41: #{tpu_custom_call.1} parent=0
    _
  %s4 = ssub.s32 1, %s2
  %s5 = scalar_select 0, %s4, %s2
  $region1: #{tpu_custom_call.1} parent=0
    #allocation2 [shape = 'u8[8192]{0}', space=vmem, size = 0x2000, scoped, tag = 'input window, operand 0']
    #allocation3 [shape = 's32[2]{0}', space=sflag, size = 0x8, scoped, tag = 'scoped memory for tpu_custom_call.1']
    #allocation4 [shape = 's32[2]{0}', space=sflag, size = 0x8, scoped, tag = 'scoped memory for tpu_custom_call.1']
    #allocation5 [shape = 'u8[57344]{0}', space=vmem, size = 0xe000, scoped, tag = 'output window, operand 0']
    %6 = vsyncpa [#allocation3], 0
    %s7 = scalar_lea.sflag [#allocation3], 1
    %8 = vsyncpa %s7, 0
    %9 = vsyncpa [#allocation4], 0
    %s10 = scalar_lea.sflag [#allocation4], 1
    %11 = vsyncpa %s10, 0
    loop: start=0, step=1, limit=4
    $region2: #{tpu_custom_call.1} parent=1 // loop_pre_header
      _
    $region3: #{tpu_custom_call.1} parent=1 // loop_header
      %s13 = sphi 0, %s17
      %p14 = scmp.ge.s32.totalorder %s13, 4
      %s23 = sphi 0, %s25
      %s26 = sphi 0, %s23
      %s27 = sphi 0, %s26
      %s43 = sphi 0, %s27
      %s49 = sphi 0, %s51
      %s52 = sphi 0, %s49
      %s53 = sphi 0, %s52
      %s69 = sphi 0, %s53
    $region4: #{tpu_custom_call.1} parent=1 // loop_header_branch
      %16 = sbr.rel (%p14) target = $region8
    $region5: #{tpu_custom_call.1} parent=1 // loop_body
      %s18 = ssub.s32 %s13, 1
      %s19 = ssub.s32 %s13, 2
      %s20 = sadd.s32 %s13, 1
      %s21 = ssub.s32 %s13, %s20
      %p22 = scmp.eq.s32.totalorder %s21, 0
      %s24 = sadd.s32 %s23, 1
      %s25 = scalar_select %p22, %s23, %s24
      %p28 = pneg %p22
      %p29 = scmp.eq.s32.totalorder %s13, 1
      %p30 = por %p28, %p29
      %p31 = scmp.ne.s32.totalorder %s23, %s26
      %p32 = scmp.eq.s32.totalorder %s13, 0
      %p33 = por %p31, %p32
      %p34 = scmp.ne.s32.totalorder %s23, %s26
      %p35 = scmp.eq.s32.totalorder %s18, 1
      %p36 = por %p34, %p35
      %p37 = scmp.ne.s32.totalorder %s26, %s27
      %p38 = scmp.eq.s32.totalorder %s18, 0
      %p39 = por %p37, %p38
      %p40 = scmp.ne.s32.totalorder %s26, %s27
      %p41 = scmp.eq.s32.totalorder %s19, 1
      %p42 = por %p40, %p41
      %p44 = scmp.ne.s32.totalorder %s27, %s43
      %p45 = scmp.eq.s32.totalorder %s19, 0
      %p46 = por %p44, %p45
      %s47 = ssub.s32 %s13, %s20
      %p48 = scmp.eq.s32.totalorder %s47, 0
      %s50 = sadd.s32 %s49, 1
      %s51 = scalar_select %p48, %s49, %s50
      %p54 = pneg %p48
      %p55 = scmp.eq.s32.totalorder %s13, 1
      %p56 = por %p54, %p55
      %p57 = scmp.ne.s32.totalorder %s49, %s52
      %p58 = scmp.eq.s32.totalorder %s13, 0
      %p59 = por %p57, %p58
      %p60 = scmp.ne.s32.totalorder %s49, %s52
      %p61 = scmp.eq.s32.totalorder %s18, 1
      %p62 = por %p60, %p61
      %p63 = scmp.ne.s32.totalorder %s52, %s53
      %p64 = scmp.eq.s32.totalorder %s18, 0
      %p65 = por %p63, %p64
      %p66 = scmp.ne.s32.totalorder %s52, %s53
      %p67 = scmp.eq.s32.totalorder %s19, 1
      %p68 = por %p66, %p67
      %p70 = scmp.ne.s32.totalorder %s53, %s69
      %p71 = scmp.eq.s32.totalorder %s19, 0
      %p72 = por %p70, %p71
      %p73 = scmp.le.s32.totalorder 1, %s13
      %p74 = scmp.lt.s32.totalorder %s13, 3
      %p75 = pnand %p73, %p74
      %p76 = pneg %p75
      // Predicated region
      $region9: #{tpu_custom_call.1} parent=5 // pred_check
        _
      $region10: #{tpu_custom_call.1} parent=5 // pred_check_branch
        %78 = sbr.rel (%p75) target = $region12
      $region11: #{tpu_custom_call.1} parent=5 // pred_region
        %s79 = ssub.s32 %s13, 1
      $region12: #{tpu_custom_call.1} parent=5 // pred_fallthru
        _
      %p80 = scmp.lt.s32.totalorder %s13, 2
      // Predicated region
      $region13: #{tpu_custom_call.1} parent=5 // pred_check
        %p81 = pneg %p80
      $region14: #{tpu_custom_call.1} parent=5 // pred_check_branch
        %83 = sbr.rel (%p81) target = $region16
      $region15: #{tpu_custom_call.1} parent=5 // pred_region
        // Predicated region
        $region17: #{tpu_custom_call.1} parent=15 // pred_check
          %p84 = pneg %p33
        $region18: #{tpu_custom_call.1} parent=15 // pred_check_branch
          %86 = sbr.rel (%p84) target = $region20
        $region19: #{tpu_custom_call.1} parent=15 // pred_region
          %s87 = sand.u32 %s23, 1
          %s88 = scalar_lea.sflag [#allocation3], %s87
          %s89 = sand.u32 %s23, 1
          %s90 = smul.addr %s89, 8
          %s91 = scalar_lea.vmem [#allocation2], %s90
          %93 = vsyncadd %s88, 0
          %s94 = smul.addr %s13, 8
          %s95 = scalar_lea.hbm %s0, %s94
          %s97 = sshll.u32 %s95, 4
          %s98 = int_to_ptr.hbm [resolvable:$true] %s97
          %s99 = sshll.u32 %s91, 4
          %s100 = int_to_ptr.vmem [resolvable:$true] %s99
          %102 = dma.hbm_to_vmem [thread:$0]  %s98, 128, %s100, %s88
        $region20: #{tpu_custom_call.1} parent=15 // pred_fallthru
          _
      $region16: #{tpu_custom_call.1} parent=5 // pred_fallthru
        _
      %p103 = scmp.le.s32.totalorder 1, %s13
      %p104 = scmp.lt.s32.totalorder %s13, 3
      %p105 = pnand %p103, %p104
      %p106 = pneg %p105
      // Predicated region
      $region21: #{tpu_custom_call.1} parent=5 // pred_check
        _
      $region22: #{tpu_custom_call.1} parent=5 // pred_check_branch
        %108 = sbr.rel (%p105) target = $region24
      $region23: #{tpu_custom_call.1} parent=5 // pred_region
        %s109 = ssub.s32 %s13, 1
        %s110 = sand.u32 %s26, 1
        %s111 = scalar_lea.sflag [#allocation3], %s110
        %s112 = sand.u32 %s26, 1
        %s113 = smul.addr %s112, 8
        %s114 = scalar_lea.vmem [#allocation2], %s113
        // Predicated region
        $region25: #{tpu_custom_call.1} parent=23 // pred_check
          %p115 = pneg %p39
        $region26: #{tpu_custom_call.1} parent=23 // pred_check_branch
          %117 = sbr.rel (%p115) target = $region28
        $region27: #{tpu_custom_call.1} parent=23 // pred_region
          %119 = dma.done %s111, 128
        $region28: #{tpu_custom_call.1} parent=23 // pred_fallthru
          _
        %s120 = sand.u32 %s26, 1
        %s121 = scalar_lea.sflag [#allocation3], %s120
        %s122 = sand.u32 %s26, 1
        %s123 = smul.addr %s122, 8
        %s124 = scalar_lea.vmem [#allocation2], %s123
        %p125 = pneg %p39
        %p126 = pneg %p36
        %p127 = pneg %p65
        %p128 = pneg %p62
        %s129 = sand.u32 %s52, 1
        %s130 = scalar_lea.sflag [#allocation4], %s129
        %s131 = sand.u32 %s52, 1
        %s132 = smul.addr %s131, 56
        %s133 = scalar_lea.vmem [#allocation5], %s132
        %v134 = vld [vmem:[%s114] sm:$0xff]
        %v135 = vlaneseq
        %v136 = vshrl.u32 %v135, 7
        %v137 = vshll.u32 1, %v136
        %v138 = vcvt.s32.f32 %v137
        %v139 = vperm.slane %v134, 0
        %v140 = vmul.f32 %v139, %v138
        %v141 = vperm.slane %v134, 1
        %v142 = vmul.f32 %v141, %v138
        %v143 = vperm.slane %v134, 2
        %v144 = vmul.f32 %v143, %v138
        %v145 = vand.u32 2147483647, %v140
        %vm146 = vcmp.le.f32.partialorder %v145, 0.7853982
        %vm147 = vcmp.lt.s32.totalorder %v140, 0
        %v148 = vand.u32 %v140, 2139095040
        %v149 = vshrl.u32 %v148, 23
        %v150 = vsub.s32 %v149, 127
        %v151 = vand.u32 2147483647, %v140
        %v152 = vand.u32 %v151, 8388607
        %v153 = vor.u32 %v152, 8388608
        %v154 = vsub.s32 0, %v153
        %v155 = vadd.s32 %v150, 1
        %vm156 = vcmp.gt.s32.totalorder %v155, 0
        %v157 = vsel %vm156, %v155, 0
        %v158 = vshrl.u32 %v157, 5
        %v159 = vand.u32 %v157, 31
        %v160 = vsub.s32 32, %v159
        %v161 = vshrl.u32 683565275, %v160
        %v162 = vshll.u32 683565275, %v159
        %v163 = vshrl.u32 2475754826, %v160
        %v164 = vor.u32 %v162, %v163
        %v165 = vshll.u32 2475754826, %v159
        %v166 = vshrl.u32 2131351028, %v160
        %v167 = vor.u32 %v165, %v166
        %v168 = vshll.u32 2131351028, %v159
        %v169 = vshrl.u32 2102212464, %v160
        %v170 = vor.u32 %v168, %v169
        %v171 = vshll.u32 2102212464, %v159
        %v172 = vshrl.u32 920167782, %v160
        %v173 = vor.u32 %v171, %v172
        %v174 = vshll.u32 920167782, %v159
        %v175 = vshrl.u32 1326507024, %v160
        %v176 = vor.u32 %v174, %v175
        %vm177 = vcmp.lt.s32.totalorder %v158, 1
        %vm178 = vcmp.lt.s32.totalorder %v158, 2
        %vm179 = vcmp.lt.s32.totalorder %v158, 3
        %vm180 = vcmp.lt.s32.totalorder %v158, 4
        %v181 = vsel %vm177, %v161, %v164
        %v182 = vsel %vm180, %v170, 2102212464
        %v183 = vsel %vm179, %v167, %v182
        %v184 = vsel %vm178, %v181, %v183
        %v185 = vsel %vm177, %v164, %v167
        %v186 = vsel %vm180, %v173, 920167782
        %v187 = vsel %vm179, %v170, %v186
        %v188 = vsel %vm178, %v185, %v187
        %v189 = vsel %vm177, %v167, %v170
        %v190 = vsel %vm180, %v176, 1326507024
        %v191 = vsel %vm179, %v173, %v190
        %v192 = vsel %vm178, %v189, %v191
        %v193 = vshll.u32 %v153, 8
        %v194 = vand.u32 %v193, 65535
        %v195 = vshrl.u32 %v193, 16
        %v196 = vand.u32 %v192, 65535
        %v197 = vshrl.u32 %v192, 16
        %v198 = vmul.u32 %v194, %v196
        %v199 = vmul.u32 %v194, %v197
        %v200 = vmul.u32 %v195, %v196
        %v201 = vmul.u32 %v195, %v197
        %v202 = vshll.u32 %v199, 16
        %v203 = vshrl.u32 %v199, 16
        %v204 = vshll.u32 %v200, 16
        %v205 = vshrl.u32 %v200, 16
        %vm206 = vc.u32 %v198, %v202
        %v207 = vsel %vm206, 1, 0
        %v208 = vadd.s32 %v198, %v202
        %v209 = vadd.s32 %v201, %v207
        %vm210 = vc.u32 %v208, %v204
        %v211 = vsel %vm210, 1, 0
        %v212 = vadd.s32 %v208, %v204
        %v213 = vadd.s32 %v209, %v211
        %v214 = vadd.s32 %v213, %v203
        %v215 = vadd.s32 %v214, %v205
        %v216 = vand.u32 %v193, 65535
        %v217 = vshrl.u32 %v193, 16
        %v218 = vand.u32 %v188, 65535
        %v219 = vshrl.u32 %v188, 16
        %v220 = vmul.u32 %v216, %v218
        %v221 = vmul.u32 %v216, %v219
        %v222 = vmul.u32 %v217, %v218
        %v223 = vmul.u32 %v217, %v219
        %v224 = vshll.u32 %v221, 16
        %v225 = vshrl.u32 %v221, 16
        %v226 = vshll.u32 %v222, 16
        %v227 = vshrl.u32 %v222, 16
        %vm228 = vc.u32 %v220, %v224
        %v229 = vsel %vm228, 1, 0
        %v230 = vadd.s32 %v220, %v224
        %v231 = vadd.s32 %v223, %v229
        %vm232 = vc.u32 %v230, %v226
        %v233 = vsel %vm232, 1, 0
        %v234 = vadd.s32 %v230, %v226
        %v235 = vadd.s32 %v231, %v233
        %v236 = vadd.s32 %v235, %v225
        %v237 = vadd.s32 %v236, %v227
        %v238 = vmul.u32 %v193, %v184
        %v239 = vadd.s32 %v215, %v234
        %vm240 = vc.u32 %v215, %v234
        %v241 = vadd.s32 %v237, 1
        %v242 = vsel %vm240, %v241, %v237
        %v243 = vadd.s32 %v238, %v242
        %v244 = vadd.s32 %v243, 536870912
        %v245 = vshrl.u32 %v244, 30
        %v246 = vshll.u32 %v245, 30
        %v247 = vsub.s32 %v243, %v246
        %vm248 = vcmp.lt.s32.totalorder %v247, 0
        %v249 = vsub.s32 0, %v247
        %v250 = vsel %vm248, %v249, %v247
        %v251 = vclz %v250
        %v252 = vsub.s32 %v251, 2
        %vm253 = vcmp.gt.s32.totalorder 0, %v252
        %v254 = vsel %vm253, 0, %v252
        %v255 = vsub.s32 32, %v254
        %v256 = vshll.u32 %v247, %v254
        %v257 = vshrl.u32 %v239, %v255
        %v258 = vor.u32 %v256, %v257
        %v259 = vsub.s32 4294967266, %v254
        %v260 = vadd.s32 %v259, 127
        %v261 = vshll.u32 %v260, 23
        %v262 = vor.u32 4788187, %v261
        %v263 = vand.u32 2147483647, %v262
        %v265 = vcvt.s32.f32 %v258
        %v266 = vmul.f32 %v265, %v263
        %v267 = vxor.u32 %v266, 2147483648
        %v268 = vsel %vm147, %v267, %v266
        %v269 = vsub.s32 4, %v245
        %v270 = vsel %vm147, %v269, %v245
        %v271 = vsel %vm146, %v140, %v268
        %v272 = vsel %vm146, 0, %v270
        %v273 = vmul.f32 %v271, %v271
        %v274 = vmul.f32 %v273, -0.001358992
        %v275 = vadd.f32 %v274, 0.041655596
        %v276 = vmul.f32 %v273, %v275
        %v277 = vadd.f32 %v276, -0.4999988
        %v278 = vmul.f32 %v273, %v277
        %v279 = vadd.f32 1.0, %v278
        %v280 = vmul.f32 %v271, %v271
        %v281 = vmul.f32 %v280, -0.00019511016
        %v282 = vadd.f32 %v281, 0.008332121
        %v283 = vmul.f32 %v280, %v282
        %v284 = vadd.f32 %v283, -0.16666654
        %v285 = vmul.f32 %v280, %v284
        %v286 = vadd.f32 %v285, 1.0
        %v287 = vmul.f32 %v286, %v271
        %vm288 = vweird.f32 %v140
        %v289 = vadd.s32 %v272, 3
        %v290 = vand.u32 %v289, 3
        %vm291 = vcmp.lt.s32.totalorder %v290, 2
        %vm292 = vcmp.eq.s32.totalorder %v290, 0
        %v293 = vxor.u32 %v287, 2147483648
        %v294 = vsel %vm292, %v279, %v293
        %vm295 = vcmp.eq.s32.totalorder %v290, 2
        %v296 = vxor.u32 %v279, 2147483648
        %v297 = vsel %vm295, %v296, %v287
        %v298 = vsel %vm291, %v294, %v297
        %v299 = vsel %vm288, nan, %v298
        %v300 = vand.u32 2147483647, %v142
        %vm301 = vcmp.le.f32.partialorder %v300, 0.7853982
        %vm302 = vcmp.lt.s32.totalorder %v142, 0
        %v303 = vand.u32 %v142, 2139095040
        %v304 = vshrl.u32 %v303, 23
        %v305 = vsub.s32 %v304, 127
        %v306 = vand.u32 2147483647, %v142
        %v307 = vand.u32 %v306, 8388607
        %v308 = vor.u32 %v307, 8388608
        %v309 = vsub.s32 0, %v308
        %v310 = vadd.s32 %v305, 1
        %vm311 = vcmp.gt.s32.totalorder %v310, 0
        %v312 = vsel %vm311, %v310, 0
        %v313 = vshrl.u32 %v312, 5
        %v314 = vand.u32 %v312, 31
        %v315 = vsub.s32 32, %v314
        %v316 = vshrl.u32 683565275, %v315
        %v317 = vshll.u32 683565275, %v314
        %v318 = vshrl.u32 2475754826, %v315
        %v319 = vor.u32 %v317, %v318
        %v320 = vshll.u32 2475754826, %v314
        %v321 = vshrl.u32 2131351028, %v315
        %v322 = vor.u32 %v320, %v321
        %v323 = vshll.u32 2131351028, %v314
        %v324 = vshrl.u32 2102212464, %v315
        %v325 = vor.u32 %v323, %v324
        %v326 = vshll.u32 2102212464, %v314
        %v327 = vshrl.u32 920167782, %v315
        %v328 = vor.u32 %v326, %v327
        %v329 = vshll.u32 920167782, %v314
        %v330 = vshrl.u32 1326507024, %v315
        %v331 = vor.u32 %v329, %v330
        %vm332 = vcmp.lt.s32.totalorder %v313, 1
        %vm333 = vcmp.lt.s32.totalorder %v313, 2
        %vm334 = vcmp.lt.s32.totalorder %v313, 3
        %vm335 = vcmp.lt.s32.totalorder %v313, 4
        %v336 = vsel %vm332, %v316, %v319
        %v337 = vsel %vm335, %v325, 2102212464
        %v338 = vsel %vm334, %v322, %v337
        %v339 = vsel %vm333, %v336, %v338
        %v340 = vsel %vm332, %v319, %v322
        %v341 = vsel %vm335, %v328, 920167782
        %v342 = vsel %vm334, %v325, %v341
        %v343 = vsel %vm333, %v340, %v342
        %v344 = vsel %vm332, %v322, %v325
        %v345 = vsel %vm335, %v331, 1326507024
        %v346 = vsel %vm334, %v328, %v345
        %v347 = vsel %vm333, %v344, %v346
        %v348 = vshll.u32 %v308, 8
        %v349 = vand.u32 %v348, 65535
        %v350 = vshrl.u32 %v348, 16
        %v351 = vand.u32 %v347, 65535
        %v352 = vshrl.u32 %v347, 16
        %v353 = vmul.u32 %v349, %v351
        %v354 = vmul.u32 %v349, %v352
        %v355 = vmul.u32 %v350, %v351
        %v356 = vmul.u32 %v350, %v352
        %v357 = vshll.u32 %v354, 16
        %v358 = vshrl.u32 %v354, 16
        %v359 = vshll.u32 %v355, 16
        %v360 = vshrl.u32 %v355, 16
        %vm361 = vc.u32 %v353, %v357
        %v362 = vsel %vm361, 1, 0
        %v363 = vadd.s32 %v353, %v357
        %v364 = vadd.s32 %v356, %v362
        %vm365 = vc.u32 %v363, %v359
        %v366 = vsel %vm365, 1, 0
        %v367 = vadd.s32 %v363, %v359
        %v368 = vadd.s32 %v364, %v366
        %v369 = vadd.s32 %v368, %v358
        %v370 = vadd.s32 %v369, %v360
        %v371 = vand.u32 %v348, 65535
        %v372 = vshrl.u32 %v348, 16
        %v373 = vand.u32 %v343, 65535
        %v374 = vshrl.u32 %v343, 16
        %v375 = vmul.u32 %v371, %v373
        %v376 = vmul.u32 %v371, %v374
        %v377 = vmul.u32 %v372, %v373
        %v378 = vmul.u32 %v372, %v374
        %v379 = vshll.u32 %v376, 16
        %v380 = vshrl.u32 %v376, 16
        %v381 = vshll.u32 %v377, 16
        %v382 = vshrl.u32 %v377, 16
        %vm383 = vc.u32 %v375, %v379
        %v384 = vsel %vm383, 1, 0
        %v385 = vadd.s32 %v375, %v379
        %v386 = vadd.s32 %v378, %v384
        %vm387 = vc.u32 %v385, %v381
        %v388 = vsel %vm387, 1, 0
        %v389 = vadd.s32 %v385, %v381
        %v390 = vadd.s32 %v386, %v388
        %v391 = vadd.s32 %v390, %v380
        %v392 = vadd.s32 %v391, %v382
        %v393 = vmul.u32 %v348, %v339
        %v394 = vadd.s32 %v370, %v389
        %vm395 = vc.u32 %v370, %v389
        %v396 = vadd.s32 %v392, 1
        %v397 = vsel %vm395, %v396, %v392
        %v398 = vadd.s32 %v393, %v397
        %v399 = vadd.s32 %v398, 536870912
        %v400 = vshrl.u32 %v399, 30
        %v401 = vshll.u32 %v400, 30
        %v402 = vsub.s32 %v398, %v401
        %vm403 = vcmp.lt.s32.totalorder %v402, 0
        %v404 = vsub.s32 0, %v402
        %v405 = vsel %vm403, %v404, %v402
        %v406 = vclz %v405
        %v407 = vsub.s32 %v406, 2
        %vm408 = vcmp.gt.s32.totalorder 0, %v407
        %v409 = vsel %vm408, 0, %v407
        %v410 = vsub.s32 32, %v409
        %v411 = vshll.u32 %v402, %v409
        %v412 = vshrl.u32 %v394, %v410
        %v413 = vor.u32 %v411, %v412
        %v414 = vsub.s32 4294967266, %v409
        %v415 = vadd.s32 %v414, 127
        %v416 = vshll.u32 %v415, 23
        %v417 = vor.u32 4788187, %v416
        %v418 = vand.u32 2147483647, %v417
        %v420 = vcvt.s32.f32 %v413
        %v421 = vmul.f32 %v420, %v418
        %v422 = vxor.u32 %v421, 2147483648
        %v423 = vsel %vm302, %v422, %v421
        %v424 = vsub.s32 4, %v400
        %v425 = vsel %vm302, %v424, %v400
        %v426 = vsel %vm301, %v142, %v423
        %v427 = vsel %vm301, 0, %v425
        %v428 = vmul.f32 %v426, %v426
        %v429 = vmul.f32 %v428, -0.001358992
        %v430 = vadd.f32 %v429, 0.041655596
        %v431 = vmul.f32 %v428, %v430
        %v432 = vadd.f32 %v431, -0.4999988
        %v433 = vmul.f32 %v428, %v432
        %v434 = vadd.f32 1.0, %v433
        %v435 = vmul.f32 %v426, %v426
        %v436 = vmul.f32 %v435, -0.00019511016
        %v437 = vadd.f32 %v436, 0.008332121
        %v438 = vmul.f32 %v435, %v437
        %v439 = vadd.f32 %v438, -0.16666654
        %v440 = vmul.f32 %v435, %v439
        %v441 = vadd.f32 %v440, 1.0
        %v442 = vmul.f32 %v441, %v426
        %vm443 = vweird.f32 %v142
        %v444 = vadd.s32 %v427, 3
        %v445 = vand.u32 %v444, 3
        %vm446 = vcmp.lt.s32.totalorder %v445, 2
        %vm447 = vcmp.eq.s32.totalorder %v445, 0
        %v448 = vxor.u32 %v442, 2147483648
        %v449 = vsel %vm447, %v434, %v448
        %vm450 = vcmp.eq.s32.totalorder %v445, 2
        %v451 = vxor.u32 %v434, 2147483648
        %v452 = vsel %vm450, %v451, %v442
        %v453 = vsel %vm446, %v449, %v452
        %v454 = vsel %vm443, nan, %v453
        %v455 = vand.u32 2147483647, %v144
        %vm456 = vcmp.le.f32.partialorder %v455, 0.7853982
        %vm457 = vcmp.lt.s32.totalorder %v144, 0
        %v458 = vand.u32 %v144, 2139095040
        %v459 = vshrl.u32 %v458, 23
        %v460 = vsub.s32 %v459, 127
        %v461 = vand.u32 2147483647, %v144
        %v462 = vand.u32 %v461, 8388607
        %v463 = vor.u32 %v462, 8388608
        %v464 = vsub.s32 0, %v463
        %v465 = vadd.s32 %v460, 1
        %vm466 = vcmp.gt.s32.totalorder %v465, 0
        %v467 = vsel %vm466, %v465, 0
        %v468 = vshrl.u32 %v467, 5
        %v469 = vand.u32 %v467, 31
        %v470 = vsub.s32 32, %v469
        %v471 = vshrl.u32 683565275, %v470
        %v472 = vshll.u32 683565275, %v469
        %v473 = vshrl.u32 2475754826, %v470
        %v474 = vor.u32 %v472, %v473
        %v475 = vshll.u32 2475754826, %v469
        %v476 = vshrl.u32 2131351028, %v470
        %v477 = vor.u32 %v475, %v476
        %v478 = vshll.u32 2131351028, %v469
        %v479 = vshrl.u32 2102212464, %v470
        %v480 = vor.u32 %v478, %v479
        %v481 = vshll.u32 2102212464, %v469
        %v482 = vshrl.u32 920167782, %v470
        %v483 = vor.u32 %v481, %v482
        %v484 = vshll.u32 920167782, %v469
        %v485 = vshrl.u32 1326507024, %v470
        %v486 = vor.u32 %v484, %v485
        %vm487 = vcmp.lt.s32.totalorder %v468, 1
        %vm488 = vcmp.lt.s32.totalorder %v468, 2
        %vm489 = vcmp.lt.s32.totalorder %v468, 3
        %vm490 = vcmp.lt.s32.totalorder %v468, 4
        %v491 = vsel %vm487, %v471, %v474
        %v492 = vsel %vm490, %v480, 2102212464
        %v493 = vsel %vm489, %v477, %v492
        %v494 = vsel %vm488, %v491, %v493
        %v495 = vsel %vm487, %v474, %v477
        %v496 = vsel %vm490, %v483, 920167782
        %v497 = vsel %vm489, %v480, %v496
        %v498 = vsel %vm488, %v495, %v497
        %v499 = vsel %vm487, %v477, %v480
        %v500 = vsel %vm490, %v486, 1326507024
        %v501 = vsel %vm489, %v483, %v500
        %v502 = vsel %vm488, %v499, %v501
        %v503 = vshll.u32 %v463, 8
        %v504 = vand.u32 %v503, 65535
        %v505 = vshrl.u32 %v503, 16
        %v506 = vand.u32 %v502, 65535
        %v507 = vshrl.u32 %v502, 16
        %v508 = vmul.u32 %v504, %v506
        %v509 = vmul.u32 %v504, %v507
        %v510 = vmul.u32 %v505, %v506
        %v511 = vmul.u32 %v505, %v507
        %v512 = vshll.u32 %v509, 16
        %v513 = vshrl.u32 %v509, 16
        %v514 = vshll.u32 %v510, 16
        %v515 = vshrl.u32 %v510, 16
        %vm516 = vc.u32 %v508, %v512
        %v517 = vsel %vm516, 1, 0
        %v518 = vadd.s32 %v508, %v512
        %v519 = vadd.s32 %v511, %v517
        %vm520 = vc.u32 %v518, %v514
        %v521 = vsel %vm520, 1, 0
        %v522 = vadd.s32 %v518, %v514
        %v523 = vadd.s32 %v519, %v521
        %v524 = vadd.s32 %v523, %v513
        %v525 = vadd.s32 %v524, %v515
        %v526 = vand.u32 %v503, 65535
        %v527 = vshrl.u32 %v503, 16
        %v528 = vand.u32 %v498, 65535
        %v529 = vshrl.u32 %v498, 16
        %v530 = vmul.u32 %v526, %v528
        %v531 = vmul.u32 %v526, %v529
        %v532 = vmul.u32 %v527, %v528
        %v533 = vmul.u32 %v527, %v529
        %v534 = vshll.u32 %v531, 16
        %v535 = vshrl.u32 %v531, 16
        %v536 = vshll.u32 %v532, 16
        %v537 = vshrl.u32 %v532, 16
        %vm538 = vc.u32 %v530, %v534
        %v539 = vsel %vm538, 1, 0
        %v540 = vadd.s32 %v530, %v534
        %v541 = vadd.s32 %v533, %v539
        %vm542 = vc.u32 %v540, %v536
        %v543 = vsel %vm542, 1, 0
        %v544 = vadd.s32 %v540, %v536
        %v545 = vadd.s32 %v541, %v543
        %v546 = vadd.s32 %v545, %v535
        %v547 = vadd.s32 %v546, %v537
        %v548 = vmul.u32 %v503, %v494
        %v549 = vadd.s32 %v525, %v544
        %vm550 = vc.u32 %v525, %v544
        %v551 = vadd.s32 %v547, 1
        %v552 = vsel %vm550, %v551, %v547
        %v553 = vadd.s32 %v548, %v552
        %v554 = vadd.s32 %v553, 536870912
        %v555 = vshrl.u32 %v554, 30
        %v556 = vshll.u32 %v555, 30
        %v557 = vsub.s32 %v553, %v556
        %vm558 = vcmp.lt.s32.totalorder %v557, 0
        %v559 = vsub.s32 0, %v557
        %v560 = vsel %vm558, %v559, %v557
        %v561 = vclz %v560
        %v562 = vsub.s32 %v561, 2
        %vm563 = vcmp.gt.s32.totalorder 0, %v562
        %v564 = vsel %vm563, 0, %v562
        %v565 = vsub.s32 32, %v564
        %v566 = vshll.u32 %v557, %v564
        %v567 = vshrl.u32 %v549, %v565
        %v568 = vor.u32 %v566, %v567
        %v569 = vsub.s32 4294967266, %v564
        %v570 = vadd.s32 %v569, 127
        %v571 = vshll.u32 %v570, 23
        %v572 = vor.u32 4788187, %v571
        %v573 = vand.u32 2147483647, %v572
        %v575 = vcvt.s32.f32 %v568
        %v576 = vmul.f32 %v575, %v573
        %v577 = vxor.u32 %v576, 2147483648
        %v578 = vsel %vm457, %v577, %v576
        %v579 = vsub.s32 4, %v555
        %v580 = vsel %vm457, %v579, %v555
        %v581 = vsel %vm456, %v144, %v578
        %v582 = vsel %vm456, 0, %v580
        %v583 = vmul.f32 %v581, %v581
        %v584 = vmul.f32 %v583, -0.001358992
        %v585 = vadd.f32 %v584, 0.041655596
        %v586 = vmul.f32 %v583, %v585
        %v587 = vadd.f32 %v586, -0.4999988
        %v588 = vmul.f32 %v583, %v587
        %v589 = vadd.f32 1.0, %v588
        %v590 = vmul.f32 %v581, %v581
        %v591 = vmul.f32 %v590, -0.00019511016
        %v592 = vadd.f32 %v591, 0.008332121
        %v593 = vmul.f32 %v590, %v592
        %v594 = vadd.f32 %v593, -0.16666654
        %v595 = vmul.f32 %v590, %v594
        %v596 = vadd.f32 %v595, 1.0
        %v597 = vmul.f32 %v596, %v581
        %vm598 = vweird.f32 %v144
        %v599 = vadd.s32 %v582, 3
        %v600 = vand.u32 %v599, 3
        %vm601 = vcmp.lt.s32.totalorder %v600, 2
        %vm602 = vcmp.eq.s32.totalorder %v600, 0
        %v603 = vxor.u32 %v597, 2147483648
        %v604 = vsel %vm602, %v589, %v603
        %vm605 = vcmp.eq.s32.totalorder %v600, 2
        %v606 = vxor.u32 %v589, 2147483648
        %v607 = vsel %vm605, %v606, %v597
        %v608 = vsel %vm601, %v604, %v607
        %v609 = vsel %vm598, nan, %v608
        %v610 = vand.u32 2147483647, %v140
        %vm611 = vcmp.le.f32.partialorder %v610, 0.7853982
        %vm612 = vcmp.lt.s32.totalorder %v140, 0
        %v613 = vand.u32 %v140, 2139095040
        %v614 = vshrl.u32 %v613, 23
        %v615 = vsub.s32 %v614, 127
        %v616 = vand.u32 2147483647, %v140
        %v617 = vand.u32 %v616, 8388607
        %v618 = vor.u32 %v617, 8388608
        %v619 = vsub.s32 0, %v618
        %v620 = vadd.s32 %v615, 1
        %vm621 = vcmp.gt.s32.totalorder %v620, 0
        %v622 = vsel %vm621, %v620, 0
        %v623 = vshrl.u32 %v622, 5
        %v624 = vand.u32 %v622, 31
        %v625 = vsub.s32 32, %v624
        %v626 = vshrl.u32 683565275, %v625
        %v627 = vshll.u32 683565275, %v624
        %v628 = vshrl.u32 2475754826, %v625
        %v629 = vor.u32 %v627, %v628
        %v630 = vshll.u32 2475754826, %v624
        %v631 = vshrl.u32 2131351028, %v625
        %v632 = vor.u32 %v630, %v631
        %v633 = vshll.u32 2131351028, %v624
        %v634 = vshrl.u32 2102212464, %v625
        %v635 = vor.u32 %v633, %v634
        %v636 = vshll.u32 2102212464, %v624
        %v637 = vshrl.u32 920167782, %v625
        %v638 = vor.u32 %v636, %v637
        %v639 = vshll.u32 920167782, %v624
        %v640 = vshrl.u32 1326507024, %v625
        %v641 = vor.u32 %v639, %v640
        %vm642 = vcmp.lt.s32.totalorder %v623, 1
        %vm643 = vcmp.lt.s32.totalorder %v623, 2
        %vm644 = vcmp.lt.s32.totalorder %v623, 3
        %vm645 = vcmp.lt.s32.totalorder %v623, 4
        %v646 = vsel %vm642, %v626, %v629
        %v647 = vsel %vm645, %v635, 2102212464
        %v648 = vsel %vm644, %v632, %v647
        %v649 = vsel %vm643, %v646, %v648
        %v650 = vsel %vm642, %v629, %v632
        %v651 = vsel %vm645, %v638, 920167782
        %v652 = vsel %vm644, %v635, %v651
        %v653 = vsel %vm643, %v650, %v652
        %v654 = vsel %vm642, %v632, %v635
        %v655 = vsel %vm645, %v641, 1326507024
        %v656 = vsel %vm644, %v638, %v655
        %v657 = vsel %vm643, %v654, %v656
        %v658 = vshll.u32 %v618, 8
        %v659 = vand.u32 %v658, 65535
        %v660 = vshrl.u32 %v658, 16
        %v661 = vand.u32 %v657, 65535
        %v662 = vshrl.u32 %v657, 16
        %v663 = vmul.u32 %v659, %v661
        %v664 = vmul.u32 %v659, %v662
        %v665 = vmul.u32 %v660, %v661
        %v666 = vmul.u32 %v660, %v662
        %v667 = vshll.u32 %v664, 16
        %v668 = vshrl.u32 %v664, 16
        %v669 = vshll.u32 %v665, 16
        %v670 = vshrl.u32 %v665, 16
        %vm671 = vc.u32 %v663, %v667
        %v672 = vsel %vm671, 1, 0
        %v673 = vadd.s32 %v663, %v667
        %v674 = vadd.s32 %v666, %v672
        %vm675 = vc.u32 %v673, %v669
        %v676 = vsel %vm675, 1, 0
        %v677 = vadd.s32 %v673, %v669
        %v678 = vadd.s32 %v674, %v676
        %v679 = vadd.s32 %v678, %v668
        %v680 = vadd.s32 %v679, %v670
        %v681 = vand.u32 %v658, 65535
        %v682 = vshrl.u32 %v658, 16
        %v683 = vand.u32 %v653, 65535
        %v684 = vshrl.u32 %v653, 16
        %v685 = vmul.u32 %v681, %v683
        %v686 = vmul.u32 %v681, %v684
        %v687 = vmul.u32 %v682, %v683
        %v688 = vmul.u32 %v682, %v684
        %v689 = vshll.u32 %v686, 16
        %v690 = vshrl.u32 %v686, 16
        %v691 = vshll.u32 %v687, 16
        %v692 = vshrl.u32 %v687, 16
        %vm693 = vc.u32 %v685, %v689
        %v694 = vsel %vm693, 1, 0
        %v695 = vadd.s32 %v685, %v689
        %v696 = vadd.s32 %v688, %v694
        %vm697 = vc.u32 %v695, %v691
        %v698 = vsel %vm697, 1, 0
        %v699 = vadd.s32 %v695, %v691
        %v700 = vadd.s32 %v696, %v698
        %v701 = vadd.s32 %v700, %v690
        %v702 = vadd.s32 %v701, %v692
        %v703 = vmul.u32 %v658, %v649
        %v704 = vadd.s32 %v680, %v699
        %vm705 = vc.u32 %v680, %v699
        %v706 = vadd.s32 %v702, 1
        %v707 = vsel %vm705, %v706, %v702
        %v708 = vadd.s32 %v703, %v707
        %v709 = vadd.s32 %v708, 536870912
        %v710 = vshrl.u32 %v709, 30
        %v711 = vshll.u32 %v710, 30
        %v712 = vsub.s32 %v708, %v711
        %vm713 = vcmp.lt.s32.totalorder %v712, 0
        %v714 = vsub.s32 0, %v712
        %v715 = vsel %vm713, %v714, %v712
        %v716 = vclz %v715
        %v717 = vsub.s32 %v716, 2
        %vm718 = vcmp.gt.s32.totalorder 0, %v717
        %v719 = vsel %vm718, 0, %v717
        %v720 = vsub.s32 32, %v719
        %v721 = vshll.u32 %v712, %v719
        %v722 = vshrl.u32 %v704, %v720
        %v723 = vor.u32 %v721, %v722
        %v724 = vsub.s32 4294967266, %v719
        %v725 = vadd.s32 %v724, 127
        %v726 = vshll.u32 %v725, 23
        %v727 = vor.u32 4788187, %v726
        %v728 = vand.u32 2147483647, %v727
        %v730 = vcvt.s32.f32 %v723
        %v731 = vmul.f32 %v730, %v728
        %v732 = vxor.u32 %v731, 2147483648
        %v733 = vsel %vm612, %v732, %v731
        %v734 = vsub.s32 4, %v710
        %v735 = vsel %vm612, %v734, %v710
        %v736 = vsel %vm611, %v140, %v733
        %v737 = vsel %vm611, 0, %v735
        %v738 = vmul.f32 %v736, %v736
        %v739 = vmul.f32 %v738, -0.001358992
        %v740 = vadd.f32 %v739, 0.041655596
        %v741 = vmul.f32 %v738, %v740
        %v742 = vadd.f32 %v741, -0.4999988
        %v743 = vmul.f32 %v738, %v742
        %v744 = vadd.f32 1.0, %v743
        %v745 = vmul.f32 %v736, %v736
        %v746 = vmul.f32 %v745, -0.00019511016
        %v747 = vadd.f32 %v746, 0.008332121
        %v748 = vmul.f32 %v745, %v747
        %v749 = vadd.f32 %v748, -0.16666654
        %v750 = vmul.f32 %v745, %v749
        %v751 = vadd.f32 %v750, 1.0
        %v752 = vmul.f32 %v751, %v736
        %vm753 = vweird.f32 %v140
        %v754 = vand.u32 %v737, 3
        %vm755 = vcmp.lt.s32.totalorder %v754, 2
        %vm756 = vcmp.eq.s32.totalorder %v754, 0
        %v757 = vxor.u32 %v752, 2147483648
        %v758 = vsel %vm756, %v744, %v757
        %vm759 = vcmp.eq.s32.totalorder %v754, 2
        %v760 = vxor.u32 %v744, 2147483648
        %v761 = vsel %vm759, %v760, %v752
        %v762 = vsel %vm755, %v758, %v761
        %v763 = vsel %vm753, nan, %v762
        %v764 = vand.u32 2147483647, %v142
        %vm765 = vcmp.le.f32.partialorder %v764, 0.7853982
        %vm766 = vcmp.lt.s32.totalorder %v142, 0
        %v767 = vand.u32 %v142, 2139095040
        %v768 = vshrl.u32 %v767, 23
        %v769 = vsub.s32 %v768, 127
        %v770 = vand.u32 2147483647, %v142
        %v771 = vand.u32 %v770, 8388607
        %v772 = vor.u32 %v771, 8388608
        %v773 = vsub.s32 0, %v772
        %v774 = vadd.s32 %v769, 1
        %vm775 = vcmp.gt.s32.totalorder %v774, 0
        %v776 = vsel %vm775, %v774, 0
        %v777 = vshrl.u32 %v776, 5
        %v778 = vand.u32 %v776, 31
        %v779 = vsub.s32 32, %v778
        %v780 = vshrl.u32 683565275, %v779
        %v781 = vshll.u32 683565275, %v778
        %v782 = vshrl.u32 2475754826, %v779
        %v783 = vor.u32 %v781, %v782
        %v784 = vshll.u32 2475754826, %v778
        %v785 = vshrl.u32 2131351028, %v779
        %v786 = vor.u32 %v784, %v785
        %v787 = vshll.u32 2131351028, %v778
        %v788 = vshrl.u32 2102212464, %v779
        %v789 = vor.u32 %v787, %v788
        %v790 = vshll.u32 2102212464, %v778
        %v791 = vshrl.u32 920167782, %v779
        %v792 = vor.u32 %v790, %v791
        %v793 = vshll.u32 920167782, %v778
        %v794 = vshrl.u32 1326507024, %v779
        %v795 = vor.u32 %v793, %v794
        %vm796 = vcmp.lt.s32.totalorder %v777, 1
        %vm797 = vcmp.lt.s32.totalorder %v777, 2
        %vm798 = vcmp.lt.s32.totalorder %v777, 3
        %vm799 = vcmp.lt.s32.totalorder %v777, 4
        %v800 = vsel %vm796, %v780, %v783
        %v801 = vsel %vm799, %v789, 2102212464
        %v802 = vsel %vm798, %v786, %v801
        %v803 = vsel %vm797, %v800, %v802
        %v804 = vsel %vm796, %v783, %v786
        %v805 = vsel %vm799, %v792, 920167782
        %v806 = vsel %vm798, %v789, %v805
        %v807 = vsel %vm797, %v804, %v806
        %v808 = vsel %vm796, %v786, %v789
        %v809 = vsel %vm799, %v795, 1326507024
        %v810 = vsel %vm798, %v792, %v809
        %v811 = vsel %vm797, %v808, %v810
        %v812 = vshll.u32 %v772, 8
        %v813 = vand.u32 %v812, 65535
        %v814 = vshrl.u32 %v812, 16
        %v815 = vand.u32 %v811, 65535
        %v816 = vshrl.u32 %v811, 16
        %v817 = vmul.u32 %v813, %v815
        %v818 = vmul.u32 %v813, %v816
        %v819 = vmul.u32 %v814, %v815
        %v820 = vmul.u32 %v814, %v816
        %v821 = vshll.u32 %v818, 16
        %v822 = vshrl.u32 %v818, 16
        %v823 = vshll.u32 %v819, 16
        %v824 = vshrl.u32 %v819, 16
        %vm825 = vc.u32 %v817, %v821
        %v826 = vsel %vm825, 1, 0
        %v827 = vadd.s32 %v817, %v821
        %v828 = vadd.s32 %v820, %v826
        %vm829 = vc.u32 %v827, %v823
        %v830 = vsel %vm829, 1, 0
        %v831 = vadd.s32 %v827, %v823
        %v832 = vadd.s32 %v828, %v830
        %v833 = vadd.s32 %v832, %v822
        %v834 = vadd.s32 %v833, %v824
        %v835 = vand.u32 %v812, 65535
        %v836 = vshrl.u32 %v812, 16
        %v837 = vand.u32 %v807, 65535
        %v838 = vshrl.u32 %v807, 16
        %v839 = vmul.u32 %v835, %v837
        %v840 = vmul.u32 %v835, %v838
        %v841 = vmul.u32 %v836, %v837
        %v842 = vmul.u32 %v836, %v838
        %v843 = vshll.u32 %v840, 16
        %v844 = vshrl.u32 %v840, 16
        %v845 = vshll.u32 %v841, 16
        %v846 = vshrl.u32 %v841, 16
        %vm847 = vc.u32 %v839, %v843
        %v848 = vsel %vm847, 1, 0
        %v849 = vadd.s32 %v839, %v843
        %v850 = vadd.s32 %v842, %v848
        %vm851 = vc.u32 %v849, %v845
        %v852 = vsel %vm851, 1, 0
        %v853 = vadd.s32 %v849, %v845
        %v854 = vadd.s32 %v850, %v852
        %v855 = vadd.s32 %v854, %v844
        %v856 = vadd.s32 %v855, %v846
        %v857 = vmul.u32 %v812, %v803
        %v858 = vadd.s32 %v834, %v853
        %vm859 = vc.u32 %v834, %v853
        %v860 = vadd.s32 %v856, 1
        %v861 = vsel %vm859, %v860, %v856
        %v862 = vadd.s32 %v857, %v861
        %v863 = vadd.s32 %v862, 536870912
        %v864 = vshrl.u32 %v863, 30
        %v865 = vshll.u32 %v864, 30
        %v866 = vsub.s32 %v862, %v865
        %vm867 = vcmp.lt.s32.totalorder %v866, 0
        %v868 = vsub.s32 0, %v866
        %v869 = vsel %vm867, %v868, %v866
        %v870 = vclz %v869
        %v871 = vsub.s32 %v870, 2
        %vm872 = vcmp.gt.s32.totalorder 0, %v871
        %v873 = vsel %vm872, 0, %v871
        %v874 = vsub.s32 32, %v873
        %v875 = vshll.u32 %v866, %v873
        %v876 = vshrl.u32 %v858, %v874
        %v877 = vor.u32 %v875, %v876
        %v878 = vsub.s32 4294967266, %v873
        %v879 = vadd.s32 %v878, 127
        %v880 = vshll.u32 %v879, 23
        %v881 = vor.u32 4788187, %v880
        %v882 = vand.u32 2147483647, %v881
        %v884 = vcvt.s32.f32 %v877
        %v885 = vmul.f32 %v884, %v882
        %v886 = vxor.u32 %v885, 2147483648
        %v887 = vsel %vm766, %v886, %v885
        %v888 = vsub.s32 4, %v864
        %v889 = vsel %vm766, %v888, %v864
        %v890 = vsel %vm765, %v142, %v887
        %v891 = vsel %vm765, 0, %v889
        %v892 = vmul.f32 %v890, %v890
        %v893 = vmul.f32 %v892, -0.001358992
        %v894 = vadd.f32 %v893, 0.041655596
        %v895 = vmul.f32 %v892, %v894
        %v896 = vadd.f32 %v895, -0.4999988
        %v897 = vmul.f32 %v892, %v896
        %v898 = vadd.f32 1.0, %v897
        %v899 = vmul.f32 %v890, %v890
        %v900 = vmul.f32 %v899, -0.00019511016
        %v901 = vadd.f32 %v900, 0.008332121
        %v902 = vmul.f32 %v899, %v901
        %v903 = vadd.f32 %v902, -0.16666654
        %v904 = vmul.f32 %v899, %v903
        %v905 = vadd.f32 %v904, 1.0
        %v906 = vmul.f32 %v905, %v890
        %vm907 = vweird.f32 %v142
        %v908 = vand.u32 %v891, 3
        %vm909 = vcmp.lt.s32.totalorder %v908, 2
        %vm910 = vcmp.eq.s32.totalorder %v908, 0
        %v911 = vxor.u32 %v906, 2147483648
        %v912 = vsel %vm910, %v898, %v911
        %vm913 = vcmp.eq.s32.totalorder %v908, 2
        %v914 = vxor.u32 %v898, 2147483648
        %v915 = vsel %vm913, %v914, %v906
        %v916 = vsel %vm909, %v912, %v915
        %v917 = vsel %vm907, nan, %v916
        %v918 = vand.u32 2147483647, %v144
        %vm919 = vcmp.le.f32.partialorder %v918, 0.7853982
        %vm920 = vcmp.lt.s32.totalorder %v144, 0
        %v921 = vand.u32 %v144, 2139095040
        %v922 = vshrl.u32 %v921, 23
        %v923 = vsub.s32 %v922, 127
        %v924 = vand.u32 2147483647, %v144
        %v925 = vand.u32 %v924, 8388607
        %v926 = vor.u32 %v925, 8388608
        %v927 = vsub.s32 0, %v926
        %v928 = vadd.s32 %v923, 1
        %vm929 = vcmp.gt.s32.totalorder %v928, 0
        %v930 = vsel %vm929, %v928, 0
        %v931 = vshrl.u32 %v930, 5
        %v932 = vand.u32 %v930, 31
        %v933 = vsub.s32 32, %v932
        %v934 = vshrl.u32 683565275, %v933
        %v935 = vshll.u32 683565275, %v932
        %v936 = vshrl.u32 2475754826, %v933
        %v937 = vor.u32 %v935, %v936
        %v938 = vshll.u32 2475754826, %v932
        %v939 = vshrl.u32 2131351028, %v933
        %v940 = vor.u32 %v938, %v939
        %v941 = vshll.u32 2131351028, %v932
        %v942 = vshrl.u32 2102212464, %v933
        %v943 = vor.u32 %v941, %v942
        %v944 = vshll.u32 2102212464, %v932
        %v945 = vshrl.u32 920167782, %v933
        %v946 = vor.u32 %v944, %v945
        %v947 = vshll.u32 920167782, %v932
        %v948 = vshrl.u32 1326507024, %v933
        %v949 = vor.u32 %v947, %v948
        %vm950 = vcmp.lt.s32.totalorder %v931, 1
        %vm951 = vcmp.lt.s32.totalorder %v931, 2
        %vm952 = vcmp.lt.s32.totalorder %v931, 3
        %vm953 = vcmp.lt.s32.totalorder %v931, 4
        %v954 = vsel %vm950, %v934, %v937
        %v955 = vsel %vm953, %v943, 2102212464
        %v956 = vsel %vm952, %v940, %v955
        %v957 = vsel %vm951, %v954, %v956
        %v958 = vsel %vm950, %v937, %v940
        %v959 = vsel %vm953, %v946, 920167782
        %v960 = vsel %vm952, %v943, %v959
        %v961 = vsel %vm951, %v958, %v960
        %v962 = vsel %vm950, %v940, %v943
        %v963 = vsel %vm953, %v949, 1326507024
        %v964 = vsel %vm952, %v946, %v963
        %v965 = vsel %vm951, %v962, %v964
        %v966 = vshll.u32 %v926, 8
        %v967 = vand.u32 %v966, 65535
        %v968 = vshrl.u32 %v966, 16
        %v969 = vand.u32 %v965, 65535
        %v970 = vshrl.u32 %v965, 16
        %v971 = vmul.u32 %v967, %v969
        %v972 = vmul.u32 %v967, %v970
        %v973 = vmul.u32 %v968, %v969
        %v974 = vmul.u32 %v968, %v970
        %v975 = vshll.u32 %v972, 16
        %v976 = vshrl.u32 %v972, 16
        %v977 = vshll.u32 %v973, 16
        %v978 = vshrl.u32 %v973, 16
        %vm979 = vc.u32 %v971, %v975
        %v980 = vsel %vm979, 1, 0
        %v981 = vadd.s32 %v971, %v975
        %v982 = vadd.s32 %v974, %v980
        %vm983 = vc.u32 %v981, %v977
        %v984 = vsel %vm983, 1, 0
        %v985 = vadd.s32 %v981, %v977
        %v986 = vadd.s32 %v982, %v984
        %v987 = vadd.s32 %v986, %v976
        %v988 = vadd.s32 %v987, %v978
        %v989 = vand.u32 %v966, 65535
        %v990 = vshrl.u32 %v966, 16
        %v991 = vand.u32 %v961, 65535
        %v992 = vshrl.u32 %v961, 16
        %v993 = vmul.u32 %v989, %v991
        %v994 = vmul.u32 %v989, %v992
        %v995 = vmul.u32 %v990, %v991
        %v996 = vmul.u32 %v990, %v992
        %v997 = vshll.u32 %v994, 16
        %v998 = vshrl.u32 %v994, 16
        %v999 = vshll.u32 %v995, 16
        %v1000 = vshrl.u32 %v995, 16
        %vm1001 = vc.u32 %v993, %v997
        %v1002 = vsel %vm1001, 1, 0
        %v1003 = vadd.s32 %v993, %v997
        %v1004 = vadd.s32 %v996, %v1002
        %vm1005 = vc.u32 %v1003, %v999
        %v1006 = vsel %vm1005, 1, 0
        %v1007 = vadd.s32 %v1003, %v999
        %v1008 = vadd.s32 %v1004, %v1006
        %v1009 = vadd.s32 %v1008, %v998
        %v1010 = vadd.s32 %v1009, %v1000
        %v1011 = vmul.u32 %v966, %v957
        %v1012 = vadd.s32 %v988, %v1007
        %vm1013 = vc.u32 %v988, %v1007
        %v1014 = vadd.s32 %v1010, 1
        %v1015 = vsel %vm1013, %v1014, %v1010
        %v1016 = vadd.s32 %v1011, %v1015
        %v1017 = vadd.s32 %v1016, 536870912
        %v1018 = vshrl.u32 %v1017, 30
        %v1019 = vshll.u32 %v1018, 30
        %v1020 = vsub.s32 %v1016, %v1019
        %vm1021 = vcmp.lt.s32.totalorder %v1020, 0
        %v1022 = vsub.s32 0, %v1020
        %v1023 = vsel %vm1021, %v1022, %v1020
        %v1024 = vclz %v1023
        %v1025 = vsub.s32 %v1024, 2
        %vm1026 = vcmp.gt.s32.totalorder 0, %v1025
        %v1027 = vsel %vm1026, 0, %v1025
        %v1028 = vsub.s32 32, %v1027
        %v1029 = vshll.u32 %v1020, %v1027
        %v1030 = vshrl.u32 %v1012, %v1028
        %v1031 = vor.u32 %v1029, %v1030
        %v1032 = vsub.s32 4294967266, %v1027
        %v1033 = vadd.s32 %v1032, 127
        %v1034 = vshll.u32 %v1033, 23
        %v1035 = vor.u32 4788187, %v1034
        %v1036 = vand.u32 2147483647, %v1035
        %v1038 = vcvt.s32.f32 %v1031
        %v1039 = vmul.f32 %v1038, %v1036
        %v1040 = vxor.u32 %v1039, 2147483648
        %v1041 = vsel %vm920, %v1040, %v1039
        %v1042 = vsub.s32 4, %v1018
        %v1043 = vsel %vm920, %v1042, %v1018
        %v1044 = vsel %vm919, %v144, %v1041
        %v1045 = vsel %vm919, 0, %v1043
        %v1046 = vmul.f32 %v1044, %v1044
        %v1047 = vmul.f32 %v1046, -0.001358992
        %v1048 = vadd.f32 %v1047, 0.041655596
        %v1049 = vmul.f32 %v1046, %v1048
        %v1050 = vadd.f32 %v1049, -0.4999988
        %v1051 = vmul.f32 %v1046, %v1050
        %v1052 = vadd.f32 1.0, %v1051
        %v1053 = vmul.f32 %v1044, %v1044
        %v1054 = vmul.f32 %v1053, -0.00019511016
        %v1055 = vadd.f32 %v1054, 0.008332121
        %v1056 = vmul.f32 %v1053, %v1055
        %v1057 = vadd.f32 %v1056, -0.16666654
        %v1058 = vmul.f32 %v1053, %v1057
        %v1059 = vadd.f32 %v1058, 1.0
        %v1060 = vmul.f32 %v1059, %v1044
        %vm1061 = vweird.f32 %v144
        %v1062 = vand.u32 %v1045, 3
        %vm1063 = vcmp.lt.s32.totalorder %v1062, 2
        %vm1064 = vcmp.eq.s32.totalorder %v1062, 0
        %v1065 = vxor.u32 %v1060, 2147483648
        %v1066 = vsel %vm1064, %v1052, %v1065
        %vm1067 = vcmp.eq.s32.totalorder %v1062, 2
        %v1068 = vxor.u32 %v1052, 2147483648
        %v1069 = vsel %vm1067, %v1068, %v1060
        %v1070 = vsel %vm1063, %v1066, %v1069
        %v1071 = vsel %vm1061, nan, %v1070
        %1072 = vst [vmem:[%s133] sm:$0xff] %v134
        %1073 = vst [vmem:[%s133 + $0x8] sm:$0xff] %v299
        %1074 = vst [vmem:[%s133 + $0x10] sm:$0xff] %v454
        %1075 = vst [vmem:[%s133 + $0x18] sm:$0xff] %v609
        %1076 = vst [vmem:[%s133 + $0x20] sm:$0xff] %v763
        %1077 = vst [vmem:[%s133 + $0x28] sm:$0xff] %v917
        %1078 = vst [vmem:[%s133 + $0x30] sm:$0xff] %v1071
        %s1079 = sand.u32 %s52, 1
        %s1080 = scalar_lea.sflag [#allocation4], %s1079
        %s1081 = sand.u32 %s52, 1
        %s1082 = smul.addr %s1081, 56
        %s1083 = scalar_lea.vmem [#allocation5], %s1082
        // Predicated region
        $region29: #{tpu_custom_call.1} parent=23 // pred_check
          %p1084 = pneg %p62
        $region30: #{tpu_custom_call.1} parent=23 // pred_check_branch
          %1086 = sbr.rel (%p1084) target = $region32
        $region31: #{tpu_custom_call.1} parent=23 // pred_region
          %1088 = vsyncadd %s1080, 0
          %s1089 = smul.addr %s18, 8
          %s1090 = scalar_lea.hbm %s1, %s1089
          %s1091 = sshll.u32 %s1083, 4
          %s1092 = int_to_ptr.vmem [resolvable:$true] %s1091
          %s1093 = sshll.u32 %s1090, 4
          %s1094 = int_to_ptr.hbm [resolvable:$true] %s1093
          %1099 = dma.vmem_to_hbm [thread:$0]  %s1092, 896, %s1094, %s1080, 128, 256, 8
        $region32: #{tpu_custom_call.1} parent=23 // pred_fallthru
          _
      $region24: #{tpu_custom_call.1} parent=5 // pred_fallthru
        _
      %p1100 = scmp.le.s32.totalorder 2, %s13
      // Predicated region
      $region33: #{tpu_custom_call.1} parent=5 // pred_check
        %p1101 = pneg %p1100
      $region34: #{tpu_custom_call.1} parent=5 // pred_check_branch
        %1103 = sbr.rel (%p1101) target = $region36
      $region35: #{tpu_custom_call.1} parent=5 // pred_region
        %s1104 = ssub.s32 %s13, 2
        // Predicated region
        $region37: #{tpu_custom_call.1} parent=35 // pred_check
          %p1105 = pneg %p68
        $region38: #{tpu_custom_call.1} parent=35 // pred_check_branch
          %1107 = sbr.rel (%p1105) target = $region40
        $region39: #{tpu_custom_call.1} parent=35 // pred_region
          %s1108 = sand.u32 %s53, 1
          %s1109 = scalar_lea.sflag [#allocation4], %s1108
          %s1110 = sand.u32 %s53, 1
          %s1111 = smul.addr %s1110, 56
          %s1112 = scalar_lea.vmem [#allocation5], %s1111
          %1114 = dma.done %s1109, 896
        $region40: #{tpu_custom_call.1} parent=35 // pred_fallthru
          _
      $region36: #{tpu_custom_call.1} parent=5 // pred_fallthru
        _
    $region6: #{tpu_custom_call.1} parent=1 // loop_footer
      %s17 = sadd.s32 1, %s13
    $region7: #{tpu_custom_call.1} parent=1 // loop_footer_branch
      %12 = sbr.rel target = $region3
    $region8: #{tpu_custom_call.1} parent=1 // loop_exit
      _
    %1115 = vsyncpa [#allocation3], 1
    %s1116 = scalar_lea.sflag [#allocation3], 1
    %1117 = vsyncpa %s1116, 1
    %1118 = vsyncpa [#allocation4], 1
    %s1119 = scalar_lea.sflag [#allocation4], 1
    %1120 = vsyncpa %s1119, 1

</llo_original>
